<compile_context>
chip_gen: v5e
topology: v5e:2x2
jax: 0.10.0
libtpu: 0.0.40
codegen_flags: <defaults>
</compile_context>

<pallas_src>
import jax
import jax.numpy as jnp
from jax.experimental import pallas as pl
from jax.experimental.pallas import tpu as pltpu


def _round_up(a, m):
    return ((a + m - 1) // m) * m


def _qkv_kernel(x_ref, w_ref, b_ref, q_ref, k_ref, v_ref):
    # x_ref: (tm, d)   input rows in storage dtype (e.g. f32)
    # w_ref: (d, 3d)   fused, pre-transposed weights [Wq.T | Wk.T | Wv.T]
    # b_ref: (1, 3d)   fused f32 bias row
    # q/k/v_ref: (tm, d) outputs (lane-dense, d % 128 == 0)
    d = q_ref.shape[-1]
    x = x_ref[...].astype(w_ref.dtype)   # VPU cast, hidden under the input DMA
    for j, o_ref in enumerate((q_ref, k_ref, v_ref)):
        # Lane-aligned static slices of the resident weight/bias; each dot
        # writes straight into its output ref — no (tm, 3d) intermediate.
        y = jnp.dot(x, w_ref[:, j * d:(j + 1) * d],
                    preferred_element_type=jnp.float32)
        o_ref[...] = (y + b_ref[:, j * d:(j + 1) * d]).astype(o_ref.dtype)


def make_fused_qkv_params(wq, bq, wk, bk, wv, bv, compute_dtype=jnp.bfloat16):
    """One-time parameter prep (hoisted out of the per-call path).

    w*: (d, d) PyTorch nn.Linear weights (out_features, in_features); b*: (d,).
    Returns:
      w_fused: (d, 3d) = [Wq.T | Wk.T | Wv.T] in the MXU operand dtype
               (bf16 is MXU-native on v5e/v6e/v7x; accumulation stays f32).
      b_fused: (1, 3d) f32 bias row.
    """
    w_fused = jnp.concatenate([wq.T, wk.T, wv.T], axis=1)
    if compute_dtype is not None:
        w_fused = w_fused.astype(compute_dtype)
    b_fused = jnp.concatenate([bq, bk, bv]).astype(jnp.float32).reshape(1, -1)
    return w_fused, b_fused


def attention_layer_qkv(x, w_fused, b_fused, *, tm=512, out_dtype=None):
    """Pallas equivalent of AttentionLayer.forward.

    x:       (batch, seq, d_model)
    w_fused: (d_model, 3*d_model) from make_fused_qkv_params
    b_fused: (1, 3*d_model)
    Returns (query, key, value), each (batch, seq, d_model) in `out_dtype`
    (default: x.dtype; pass jnp.bfloat16 to halve output HBM traffic).
    """
    batch, seq, d = x.shape
    assert w_fused.shape == (d, 3 * d) and b_fused.shape == (1, 3 * d)
    assert d % 128 == 0, "d_model must be lane-aligned (multiple of 128)"
    if out_dtype is None:
        out_dtype = x.dtype

    M = batch * seq
    x2 = x.reshape(M, d)

    # --- row tile selection ------------------------------------------------
    mult = 16                                   # sublane multiple (safe for f32 & bf16)
    M_up = _round_up(M, mult)
    tm = max(mult, min(_round_up(tm, mult), M_up))
    # v7x: keep >= 4 grid steps (2 per TensorCore) when rows allow it, without
    # shrinking tiles below an MXU-filling 256 rows.
    if M_up >= 4 * 256:
        tm = min(tm, max(256, _round_up(-(-M_up // 4), mult)))

    grid = (pl.cdiv(M, tm),)                    # ragged final block is masked by Pallas

    # --- VMEM budget (double-buffered tiles + resident weights/bias) --------
    bpe_x = jnp.dtype(x2.dtype).itemsize
    bpe_w = jnp.dtype(w_fused.dtype).itemsize
    bpe_o = jnp.dtype(out_dtype).itemsize
    vmem_bytes = (2 * tm * d * bpe_x            # x tile (double-buffered)
                  + 2 * d * 3 * d * bpe_w       # fused weight slab
                  + 2 * 3 * d * 4               # fused bias
                  + 3 * 2 * tm * d * bpe_o)     # q/k/v output tiles
    vmem_limit = min(max(int(vmem_bytes * 1.5) + (4 << 20), 16 << 20), 60 << 20)

    out_sds = jax.ShapeDtypeStruct((M, d), out_dtype)
    row_spec = pl.BlockSpec((tm, d), lambda i: (i, 0))
    # Grid-invariant (VMEM-resident) weight & bias.
    # TODO(synk): for d_model >= ~1536 on v7x, add an N grid axis (or
    # pipeline_mode=pl.Buffered(1)) so the (d,3d) slab need not stay resident.
    w_spec = pl.BlockSpec((d, 3 * d), lambda i: (0, 0))
    b_spec = pl.BlockSpec((1, 3 * d), lambda i: (0, 0))

    q2, k2, v2 = pl.pallas_call(
        _qkv_kernel,
        out_shape=(out_sds, out_sds, out_sds),
        grid_spec=pltpu.PrefetchScalarGridSpec(
            num_scalar_prefetch=0,
            grid=grid,
            in_specs=[row_spec, w_spec, b_spec],
            out_specs=[row_spec, row_spec, row_spec],
        ),
        compiler_params=pltpu.CompilerParams(
            dimension_semantics=("parallel",),   # M axis shards across TCs (v7x)
            vmem_limit_bytes=vmem_limit,
        ),
    )(x2, w_fused, b_fused)

    return (q2.reshape(batch, seq, d),
            k2.reshape(batch, seq, d),
            v2.reshape(batch, seq, d))


if __name__ == "__main__":
    # Small instantiation; d_model=512 matches the PyTorch spec.
    batch, seq, d_model = 2, 8, 512

    key = jax.random.PRNGKey(0)
    kx, kq, kk, kv, kbq, kbk, kbv = jax.random.split(key, 7)

    x = jax.random.normal(kx, (batch, seq, d_model), dtype=jnp.float32)

    # Deterministic parameter init (mimics nn.Linear's uniform(-1/sqrt(d), 1/sqrt(d))).
    bound = 1.0 / jnp.sqrt(jnp.float32(d_model))
    wq = jax.random.uniform(kq, (d_model, d_model), jnp.float32, -bound, bound)
    wk = jax.random.uniform(kk, (d_model, d_model), jnp.float32, -bound, bound)
    wv = jax.random.uniform(kv, (d_model, d_model), jnp.float32, -bound, bound)
    bq = jax.random.uniform(kbq, (d_model,), jnp.float32, -bound, bound)
    bk = jax.random.uniform(kbk, (d_model,), jnp.float32, -bound, bound)
    bv = jax.random.uniform(kbv, (d_model,), jnp.float32, -bound, bound)

    # One-time weight prep (hoisted out of the forward path). bf16 MXU operands
    # are native on v5e/v6e/v7x; accumulation and bias add stay f32.
    w_fused, b_fused = make_fused_qkv_params(wq, bq, wk, bk, wv, bv,
                                             compute_dtype=jnp.bfloat16)

    q, k, v = attention_layer_qkv(x, w_fused, b_fused)  # outputs keep x.dtype (f32)
    jax.block_until_ready((q, k, v))

    # Pure-JAX reference check of the PyTorch semantics (x @ W.T + b).
    q_ref = x @ wq.T + bq
    k_ref = x @ wk.T + bk
    v_ref = x @ wv.T + bv
    tol = 3e-2   # bf16 MXU operands quantize activations/weights vs the f32 PyTorch layer
    assert jnp.allclose(q, q_ref, atol=tol, rtol=tol)
    assert jnp.allclose(k, k_ref, atol=tol, rtol=tol)
    assert jnp.allclose(v, v_ref, atol=tol, rtol=tol)

    print("KERNEL_OK")
</pallas_src>

<mosaic_0001>
module attributes {stable_mosaic.version = 11 : i64} {
  func.func @_qkv_kernel(%arg0: i32, %arg1: memref<16x512xf32, #tpu.memory_space<vmem>>, %arg2: memref<512x1536xbf16, #tpu.memory_space<vmem>>, %arg3: memref<1x1536xf32, #tpu.memory_space<vmem>>, %arg4: memref<16x512xf32, #tpu.memory_space<vmem>>, %arg5: memref<16x512xf32, #tpu.memory_space<vmem>>, %arg6: memref<16x512xf32, #tpu.memory_space<vmem>>) attributes {dimension_semantics = [#tpu.dimension_semantics<parallel>], iteration_bounds = array<i64: 1>, scalar_prefetch = 0 : i64, scratch_operands = 0 : i64, tpu.core_type = #tpu.core_type<tc>, window_params = [{transform_indices = @transform_0, window_bounds = array<i64: 16, 512>}, {pipeline_mode = #tpu.pipeline_mode<synchronous>, transform_indices = @transform_1, window_bounds = array<i64: 512, 1536>}, {pipeline_mode = #tpu.pipeline_mode<synchronous>, transform_indices = @transform_2, window_bounds = array<i64: 1, 1536>}, {transform_indices = @transform_3, window_bounds = array<i64: 16, 512>}, {transform_indices = @transform_4, window_bounds = array<i64: 16, 512>}, {transform_indices = @transform_5, window_bounds = array<i64: 16, 512>}]} {
    %c0 = arith.constant 0 : index
    %c0_0 = arith.constant 0 : index
    %0 = vector.load %arg1[%c0, %c0_0] : memref<16x512xf32, #tpu.memory_space<vmem>>, vector<16x512xf32>
    %1 = arith.truncf %0 : vector<16x512xf32> to vector<16x512xbf16>
    %c0_1 = arith.constant 0 : index
    %c0_2 = arith.constant 0 : index
    %2 = vector.load %arg2[%c0_1, %c0_2] : memref<512x1536xbf16, #tpu.memory_space<vmem>>, vector<512x512xbf16>
    %cst = arith.constant dense<0.000000e+00> : vector<16x512xf32>
    %3 = tpu.matmul %1, %2, %cst {dimension_numbers = #tpu.dot_dimension_numbers<[1], [0], [0], [1], [0, 0, 1, 1], [], []>} : vector<16x512xbf16>, vector<512x512xbf16>, vector<16x512xf32> -> vector<16x512xf32>
    %c0_3 = arith.constant 0 : index
    %c0_4 = arith.constant 0 : index
    %4 = vector.load %arg3[%c0_3, %c0_4] : memref<1x1536xf32, #tpu.memory_space<vmem>>, vector<1x512xf32>
    %5 = vector.broadcast %4 : vector<1x512xf32> to vector<16x512xf32>
    %6 = arith.addf %3, %5 : vector<16x512xf32>
    %c0_5 = arith.constant 0 : index
    %c0_6 = arith.constant 0 : index
    %7 = vector.load %arg4[%c0_5, %c0_6] : memref<16x512xf32, #tpu.memory_space<vmem>>, vector<16x512xf32>
    tpu.vector_store %arg4[%c0_5, %c0_6], %6 {strides = array<i32>} : memref<16x512xf32, #tpu.memory_space<vmem>>, vector<16x512xf32>,
    %c0_7 = arith.constant 0 : index
    %c512 = arith.constant 512 : index
    %8 = vector.load %arg2[%c0_7, %c512] : memref<512x1536xbf16, #tpu.memory_space<vmem>>, vector<512x512xbf16>
    %cst_8 = arith.constant dense<0.000000e+00> : vector<16x512xf32>
    %9 = tpu.matmul %1, %8, %cst_8 {dimension_numbers = #tpu.dot_dimension_numbers<[1], [0], [0], [1], [0, 0, 1, 1], [], []>} : vector<16x512xbf16>, vector<512x512xbf16>, vector<16x512xf32> -> vector<16x512xf32>
    %c0_9 = arith.constant 0 : index
    %c512_10 = arith.constant 512 : index
    %10 = vector.load %arg3[%c0_9, %c512_10] : memref<1x1536xf32, #tpu.memory_space<vmem>>, vector<1x512xf32>
    %11 = vector.broadcast %10 : vector<1x512xf32> to vector<16x512xf32>
    %12 = arith.addf %9, %11 : vector<16x512xf32>
    %c0_11 = arith.constant 0 : index
    %c0_12 = arith.constant 0 : index
    %13 = vector.load %arg5[%c0_11, %c0_12] : memref<16x512xf32, #tpu.memory_space<vmem>>, vector<16x512xf32>
    tpu.vector_store %arg5[%c0_11, %c0_12], %12 {strides = array<i32>} : memref<16x512xf32, #tpu.memory_space<vmem>>, vector<16x512xf32>,
    %c0_13 = arith.constant 0 : index
    %c1024 = arith.constant 1024 : index
    %14 = vector.load %arg2[%c0_13, %c1024] : memref<512x1536xbf16, #tpu.memory_space<vmem>>, vector<512x512xbf16>
    %cst_14 = arith.constant dense<0.000000e+00> : vector<16x512xf32>
    %15 = tpu.matmul %1, %14, %cst_14 {dimension_numbers = #tpu.dot_dimension_numbers<[1], [0], [0], [1], [0, 0, 1, 1], [], []>} : vector<16x512xbf16>, vector<512x512xbf16>, vector<16x512xf32> -> vector<16x512xf32>
    %c0_15 = arith.constant 0 : index
    %c1024_16 = arith.constant 1024 : index
    %16 = vector.load %arg3[%c0_15, %c1024_16] : memref<1x1536xf32, #tpu.memory_space<vmem>>, vector<1x512xf32>
    %17 = vector.broadcast %16 : vector<1x512xf32> to vector<16x512xf32>
    %18 = arith.addf %15, %17 : vector<16x512xf32>
    %c0_17 = arith.constant 0 : index
    %c0_18 = arith.constant 0 : index
    %19 = vector.load %arg6[%c0_17, %c0_18] : memref<16x512xf32, #tpu.memory_space<vmem>>, vector<16x512xf32>
    tpu.vector_store %arg6[%c0_17, %c0_18], %18 {strides = array<i32>} : memref<16x512xf32, #tpu.memory_space<vmem>>, vector<16x512xf32>,
    return
  }
  func.func @transform_0(%arg0: i32) -> (i32, i32) {
    %c0_i32 = arith.constant 0 : i32
    %c0_i32_0 = arith.constant 0 : i32
    return %arg0, %c0_i32 : i32, i32
  }
  func.func @transform_1(%arg0: i32) -> (i32, i32) {
    %c0_i32 = arith.constant 0 : i32
    %c0_i32_0 = arith.constant 0 : i32
    %c0_i32_1 = arith.constant 0 : i32
    return %c0_i32, %c0_i32_0 : i32, i32
  }
  func.func @transform_2(%arg0: i32) -> (i32, i32) {
    %c0_i32 = arith.constant 0 : i32
    %c0_i32_0 = arith.constant 0 : i32
    %c0_i32_1 = arith.constant 0 : i32
    return %c0_i32, %c0_i32_0 : i32, i32
  }
  func.func @transform_3(%arg0: i32) -> (i32, i32) {
    %c0_i32 = arith.constant 0 : i32
    %c0_i32_0 = arith.constant 0 : i32
    return %arg0, %c0_i32 : i32, i32
  }
  func.func @transform_4(%arg0: i32) -> (i32, i32) {
    %c0_i32 = arith.constant 0 : i32
    %c0_i32_0 = arith.constant 0 : i32
    return %arg0, %c0_i32 : i32, i32
  }
  func.func @transform_5(%arg0: i32) -> (i32, i32) {
    %c0_i32 = arith.constant 0 : i32
    %c0_i32_0 = arith.constant 0 : i32
    return %arg0, %c0_i32 : i32, i32
  }
}

</mosaic_0001>

<llo_original>
// kernel: tpu_custom_call.1
$region0: #{tpu_custom_call.1}
  #allocation0 [shape = 'u32[]', space=smem, size = 0x4, offset = 0x4, fixed_abs, tag = 'smem constant byte address 0x4 - core index']
  #allocation1 [shape = 'u32[72,128]{1,0:T(1,128)}', space=vmem, size = 0x9000, scoped, tag = 'internal scratch']
  %s0 = inlined_call_operand.hbm [shape: f32[16,512], index: 0, kind: input, shape index: {}]
  %s1 = inlined_call_operand.hbm [shape: bf16[512,1536], index: 1, kind: input, shape index: {}]
  %s2 = inlined_call_operand.hbm [shape: f32[1,1536], index: 2, kind: input, shape index: {}]
  %s3 = inlined_call_operand.hbm [shape: f32[16,512], index: 3, kind: output, shape index: {0}]
  %s4 = inlined_call_operand.hbm [shape: f32[16,512], index: 4, kind: output, shape index: {1}]
  %s5 = inlined_call_operand.hbm [shape: f32[16,512], index: 5, kind: output, shape index: {2}]
  %6 = xla_tuple %s3, %s4, %s5
  %s7 = sld [smem:[#allocation0]]
  $region50: #{tpu_custom_call.1} parent=0
    _
  %s9 = ssub.s32 1, %s7
  %s10 = scalar_select 0, %s9, %s7
  $region1: #{tpu_custom_call.1} parent=0
    #allocation2 [shape = 'u8[32768]{0}', space=vmem, size = 0x8000, scoped, tag = 'input window, operand 0, single buffered']
    #allocation3 [shape = 's32[1]{0}', space=sflag, size = 0x4, scoped, tag = 'scoped memory for tpu_custom_call.1']
    #allocation4 [shape = 's32[1]{0}', space=sflag, size = 0x4, scoped, tag = 'scoped memory for tpu_custom_call.1']
    #allocation5 [shape = 'u8[1572864]{0}', space=vmem, size = 0x180000, scoped, tag = 'input window, operand 1, single buffered']
    #allocation6 [shape = 's32[1]{0}', space=sflag, size = 0x4, scoped, tag = 'scoped memory for tpu_custom_call.1']
    #allocation7 [shape = 'u8[6144]{0}', space=vmem, size = 0x1800, scoped, tag = 'input window, operand 2, single buffered']
    #allocation8 [shape = 'u8[32768]{0}', space=vmem, size = 0x8000, scoped, tag = 'output window, operand 0, single buffered']
    #allocation9 [shape = 'u8[32768]{0}', space=vmem, size = 0x8000, scoped, tag = 'output window, operand 1, single buffered']
    #allocation10 [shape = 's32[1]{0}', space=sflag, size = 0x4, scoped, tag = 'scoped memory for tpu_custom_call.1']
    #allocation11 [shape = 'u8[32768]{0}', space=vmem, size = 0x8000, scoped, tag = 'output window, operand 2, single buffered']
    %11 = vsyncpa [#allocation3], 0
    %12 = vsyncpa [#allocation6], 0
    %13 = vsyncpa [#allocation4], 0
    %14 = vsyncpa [#allocation10], 0
    // Predicated region
    $region2: #{tpu_custom_call.1} parent=1 // pred_check
      _
    $region3: #{tpu_custom_call.1} parent=1 // pred_check_branch
      %16 = sbr.rel (0) target = $region5
    $region4: #{tpu_custom_call.1} parent=1 // pred_region
      %18 = vsyncadd [#allocation3], 0
      %s19 = sshll.u32 %s0, 4
      %s20 = int_to_ptr.hbm [resolvable:$true] %s19
      %s21 = sshll.u32 [#allocation2], 4
      %s22 = int_to_ptr.vmem [resolvable:$true] %s21
      %27 = dma.hbm_to_vmem [thread:$0]  %s20, 1024, %s22, [#allocation3], 512, 512, 32
    $region5: #{tpu_custom_call.1} parent=1 // pred_fallthru
      _
    // Predicated region
    $region6: #{tpu_custom_call.1} parent=1 // pred_check
      _
    $region7: #{tpu_custom_call.1} parent=1 // pred_check_branch
      %29 = sbr.rel (0) target = $region9
    $region8: #{tpu_custom_call.1} parent=1 // pred_region
      %31 = vsyncadd [#allocation6], 0
      %s32 = sshll.u32 %s1, 4
      %s33 = int_to_ptr.hbm [resolvable:$true] %s32
      %s34 = sshll.u32 [#allocation5], 4
      %s35 = int_to_ptr.vmem [resolvable:$true] %s34
      %40 = dma.hbm_to_vmem [thread:$0]  %s33, 49152, %s35, [#allocation6], 768, 768, 48
    $region9: #{tpu_custom_call.1} parent=1 // pred_fallthru
      _
    // Predicated region
    $region10: #{tpu_custom_call.1} parent=1 // pred_check
      _
    $region11: #{tpu_custom_call.1} parent=1 // pred_check_branch
      %42 = sbr.rel (0) target = $region13
    $region12: #{tpu_custom_call.1} parent=1 // pred_region
      %44 = vsyncadd [#allocation6], 0
      %s46 = sshll.u32 %s2, 4
      %s47 = int_to_ptr.hbm [resolvable:$true] %s46
      %s48 = sshll.u32 [#allocation7], 4
      %s49 = int_to_ptr.vmem [resolvable:$true] %s48
      %51 = dma.hbm_to_vmem [thread:$0]  %s47, 192, %s49, [#allocation6]
    $region13: #{tpu_custom_call.1} parent=1 // pred_fallthru
      _
    // Predicated region
    $region14: #{tpu_custom_call.1} parent=1 // pred_check
      _
    $region15: #{tpu_custom_call.1} parent=1 // pred_check_branch
      %53 = sbr.rel (0) target = $region17
    $region16: #{tpu_custom_call.1} parent=1 // pred_region
      %55 = dma.done [#allocation3], 1024
    $region17: #{tpu_custom_call.1} parent=1 // pred_fallthru
      _
    // Predicated region
    $region18: #{tpu_custom_call.1} parent=1 // pred_check
      _
    $region19: #{tpu_custom_call.1} parent=1 // pred_check_branch
      %57 = sbr.rel (0) target = $region21
    $region20: #{tpu_custom_call.1} parent=1 // pred_region
      %59 = dma.done [#allocation6], 49152
    $region21: #{tpu_custom_call.1} parent=1 // pred_fallthru
      _
    // Predicated region
    $region22: #{tpu_custom_call.1} parent=1 // pred_check
      _
    $region23: #{tpu_custom_call.1} parent=1 // pred_check_branch
      %61 = sbr.rel (0) target = $region25
    $region24: #{tpu_custom_call.1} parent=1 // pred_region
      %63 = dma.done [#allocation6], 192
    $region25: #{tpu_custom_call.1} parent=1 // pred_fallthru
      _
    %v64 = vld [vmem:[#allocation2] sm:$0xff]
    %v65 = vld [vmem:[#allocation2 + $0x8] sm:$0xff]
    %v66 = vld [vmem:[#allocation2 + $0x10] sm:$0xff]
    %v67 = vld [vmem:[#allocation2 + $0x18] sm:$0xff]
    %v68 = vld [vmem:[#allocation2 + $0x20] sm:$0xff]
    %v69 = vld [vmem:[#allocation2 + $0x28] sm:$0xff]
    %v70 = vld [vmem:[#allocation2 + $0x30] sm:$0xff]
    %v71 = vld [vmem:[#allocation2 + $0x38] sm:$0xff]
    %v72 = vpack.c.bf16 %v68, %v64
    %v73 = vpack.c.bf16 %v69, %v65
    %v74 = vpack.c.bf16 %v70, %v66
    %v75 = vpack.c.bf16 %v71, %v67
    %v76 = vld [vmem:[#allocation5] sm:$0xff]
    %v77 = vld [vmem:[#allocation5 + $0x8] sm:$0xff]
    %v78 = vld [vmem:[#allocation5 + $0x30] sm:$0xff]
    %v79 = vld [vmem:[#allocation5 + $0x38] sm:$0xff]
    %v80 = vld [vmem:[#allocation5 + $0x60] sm:$0xff]
    %v81 = vld [vmem:[#allocation5 + $0x68] sm:$0xff]
    %v82 = vld [vmem:[#allocation5 + $0x90] sm:$0xff]
    %v83 = vld [vmem:[#allocation5 + $0x98] sm:$0xff]
    %v84 = vld [vmem:[#allocation5 + $0xc0] sm:$0xff]
    %v85 = vld [vmem:[#allocation5 + $0xc8] sm:$0xff]
    %v86 = vld [vmem:[#allocation5 + $0xf0] sm:$0xff]
    %v87 = vld [vmem:[#allocation5 + $0xf8] sm:$0xff]
    %v88 = vld [vmem:[#allocation5 + $0x120] sm:$0xff]
    %v89 = vld [vmem:[#allocation5 + $0x128] sm:$0xff]
    %v90 = vld [vmem:[#allocation5 + $0x150] sm:$0xff]
    %v91 = vld [vmem:[#allocation5 + $0x158] sm:$0xff]
    %v92 = vld [vmem:[#allocation5 + $0x180] sm:$0xff]
    %v93 = vld [vmem:[#allocation5 + $0x188] sm:$0xff]
    %v94 = vld [vmem:[#allocation5 + $0x1b0] sm:$0xff]
    %v95 = vld [vmem:[#allocation5 + $0x1b8] sm:$0xff]
    %v96 = vld [vmem:[#allocation5 + $0x1e0] sm:$0xff]
    %v97 = vld [vmem:[#allocation5 + $0x1e8] sm:$0xff]
    %v98 = vld [vmem:[#allocation5 + $0x210] sm:$0xff]
    %v99 = vld [vmem:[#allocation5 + $0x218] sm:$0xff]
    %v100 = vld [vmem:[#allocation5 + $0x240] sm:$0xff]
    %v101 = vld [vmem:[#allocation5 + $0x248] sm:$0xff]
    %v102 = vld [vmem:[#allocation5 + $0x270] sm:$0xff]
    %v103 = vld [vmem:[#allocation5 + $0x278] sm:$0xff]
    %v104 = vld [vmem:[#allocation5 + $0x2a0] sm:$0xff]
    %v105 = vld [vmem:[#allocation5 + $0x2a8] sm:$0xff]
    %v106 = vld [vmem:[#allocation5 + $0x2d0] sm:$0xff]
    %v107 = vld [vmem:[#allocation5 + $0x2d8] sm:$0xff]
    %v108 = vld [vmem:[#allocation5 + $0x300] sm:$0xff]
    %v109 = vld [vmem:[#allocation5 + $0x308] sm:$0xff]
    %v110 = vld [vmem:[#allocation5 + $0x330] sm:$0xff]
    %v111 = vld [vmem:[#allocation5 + $0x338] sm:$0xff]
    %v112 = vld [vmem:[#allocation5 + $0x360] sm:$0xff]
    %v113 = vld [vmem:[#allocation5 + $0x368] sm:$0xff]
    %v114 = vld [vmem:[#allocation5 + $0x390] sm:$0xff]
    %v115 = vld [vmem:[#allocation5 + $0x398] sm:$0xff]
    %v116 = vld [vmem:[#allocation5 + $0x3c0] sm:$0xff]
    %v117 = vld [vmem:[#allocation5 + $0x3c8] sm:$0xff]
    %v118 = vld [vmem:[#allocation5 + $0x3f0] sm:$0xff]
    %v119 = vld [vmem:[#allocation5 + $0x3f8] sm:$0xff]
    %v120 = vld [vmem:[#allocation5 + $0x420] sm:$0xff]
    %v121 = vld [vmem:[#allocation5 + $0x428] sm:$0xff]
    %v122 = vld [vmem:[#allocation5 + $0x450] sm:$0xff]
    %v123 = vld [vmem:[#allocation5 + $0x458] sm:$0xff]
    %v124 = vld [vmem:[#allocation5 + $0x480] sm:$0xff]
    %v125 = vld [vmem:[#allocation5 + $0x488] sm:$0xff]
    %v126 = vld [vmem:[#allocation5 + $0x4b0] sm:$0xff]
    %v127 = vld [vmem:[#allocation5 + $0x4b8] sm:$0xff]
    %v128 = vld [vmem:[#allocation5 + $0x4e0] sm:$0xff]
    %v129 = vld [vmem:[#allocation5 + $0x4e8] sm:$0xff]
    %v130 = vld [vmem:[#allocation5 + $0x510] sm:$0xff]
    %v131 = vld [vmem:[#allocation5 + $0x518] sm:$0xff]
    %v132 = vld [vmem:[#allocation5 + $0x540] sm:$0xff]
    %v133 = vld [vmem:[#allocation5 + $0x548] sm:$0xff]
    %v134 = vld [vmem:[#allocation5 + $0x570] sm:$0xff]
    %v135 = vld [vmem:[#allocation5 + $0x578] sm:$0xff]
    %v136 = vld [vmem:[#allocation5 + $0x5a0] sm:$0xff]
    %v137 = vld [vmem:[#allocation5 + $0x5a8] sm:$0xff]
    %v138 = vld [vmem:[#allocation5 + $0x5d0] sm:$0xff]
    %v139 = vld [vmem:[#allocation5 + $0x5d8] sm:$0xff]
    %v140 = vld [vmem:[#allocation5 + $0x600] sm:$0xff]
    %v141 = vld [vmem:[#allocation5 + $0x608] sm:$0xff]
    %v142 = vld [vmem:[#allocation5 + $0x630] sm:$0xff]
    %v143 = vld [vmem:[#allocation5 + $0x638] sm:$0xff]
    %v144 = vld [vmem:[#allocation5 + $0x660] sm:$0xff]
    %v145 = vld [vmem:[#allocation5 + $0x668] sm:$0xff]
    %v146 = vld [vmem:[#allocation5 + $0x690] sm:$0xff]
    %v147 = vld [vmem:[#allocation5 + $0x698] sm:$0xff]
    %v148 = vld [vmem:[#allocation5 + $0x6c0] sm:$0xff]
    %v149 = vld [vmem:[#allocation5 + $0x6c8] sm:$0xff]
    %v150 = vld [vmem:[#allocation5 + $0x6f0] sm:$0xff]
    %v151 = vld [vmem:[#allocation5 + $0x6f8] sm:$0xff]
    %v152 = vld [vmem:[#allocation5 + $0x720] sm:$0xff]
    %v153 = vld [vmem:[#allocation5 + $0x728] sm:$0xff]
    %v154 = vld [vmem:[#allocation5 + $0x750] sm:$0xff]
    %v155 = vld [vmem:[#allocation5 + $0x758] sm:$0xff]
    %v156 = vld [vmem:[#allocation5 + $0x780] sm:$0xff]
    %v157 = vld [vmem:[#allocation5 + $0x788] sm:$0xff]
    %v158 = vld [vmem:[#allocation5 + $0x7b0] sm:$0xff]
    %v159 = vld [vmem:[#allocation5 + $0x7b8] sm:$0xff]
    %v160 = vld [vmem:[#allocation5 + $0x7e0] sm:$0xff]
    %v161 = vld [vmem:[#allocation5 + $0x7e8] sm:$0xff]
    %v162 = vld [vmem:[#allocation5 + $0x810] sm:$0xff]
    %v163 = vld [vmem:[#allocation5 + $0x818] sm:$0xff]
    %v164 = vld [vmem:[#allocation5 + $0x840] sm:$0xff]
    %v165 = vld [vmem:[#allocation5 + $0x848] sm:$0xff]
    %v166 = vld [vmem:[#allocation5 + $0x870] sm:$0xff]
    %v167 = vld [vmem:[#allocation5 + $0x878] sm:$0xff]
    %v168 = vld [vmem:[#allocation5 + $0x8a0] sm:$0xff]
    %v169 = vld [vmem:[#allocation5 + $0x8a8] sm:$0xff]
    %v170 = vld [vmem:[#allocation5 + $0x8d0] sm:$0xff]
    %v171 = vld [vmem:[#allocation5 + $0x8d8] sm:$0xff]
    %v172 = vld [vmem:[#allocation5 + $0x900] sm:$0xff]
    %v173 = vld [vmem:[#allocation5 + $0x908] sm:$0xff]
    %v174 = vld [vmem:[#allocation5 + $0x930] sm:$0xff]
    %v175 = vld [vmem:[#allocation5 + $0x938] sm:$0xff]
    %v176 = vld [vmem:[#allocation5 + $0x960] sm:$0xff]
    %v177 = vld [vmem:[#allocation5 + $0x968] sm:$0xff]
    %v178 = vld [vmem:[#allocation5 + $0x990] sm:$0xff]
    %v179 = vld [vmem:[#allocation5 + $0x998] sm:$0xff]
    %v180 = vld [vmem:[#allocation5 + $0x9c0] sm:$0xff]
    %v181 = vld [vmem:[#allocation5 + $0x9c8] sm:$0xff]
    %v182 = vld [vmem:[#allocation5 + $0x9f0] sm:$0xff]
    %v183 = vld [vmem:[#allocation5 + $0x9f8] sm:$0xff]
    %v184 = vld [vmem:[#allocation5 + $0xa20] sm:$0xff]
    %v185 = vld [vmem:[#allocation5 + $0xa28] sm:$0xff]
    %v186 = vld [vmem:[#allocation5 + $0xa50] sm:$0xff]
    %v187 = vld [vmem:[#allocation5 + $0xa58] sm:$0xff]
    %v188 = vld [vmem:[#allocation5 + $0xa80] sm:$0xff]
    %v189 = vld [vmem:[#allocation5 + $0xa88] sm:$0xff]
    %v190 = vld [vmem:[#allocation5 + $0xab0] sm:$0xff]
    %v191 = vld [vmem:[#allocation5 + $0xab8] sm:$0xff]
    %v192 = vld [vmem:[#allocation5 + $0xae0] sm:$0xff]
    %v193 = vld [vmem:[#allocation5 + $0xae8] sm:$0xff]
    %v194 = vld [vmem:[#allocation5 + $0xb10] sm:$0xff]
    %v195 = vld [vmem:[#allocation5 + $0xb18] sm:$0xff]
    %v196 = vld [vmem:[#allocation5 + $0xb40] sm:$0xff]
    %v197 = vld [vmem:[#allocation5 + $0xb48] sm:$0xff]
    %v198 = vld [vmem:[#allocation5 + $0xb70] sm:$0xff]
    %v199 = vld [vmem:[#allocation5 + $0xb78] sm:$0xff]
    %v200 = vld [vmem:[#allocation5 + $0xba0] sm:$0xff]
    %v201 = vld [vmem:[#allocation5 + $0xba8] sm:$0xff]
    %v202 = vld [vmem:[#allocation5 + $0xbd0] sm:$0xff]
    %v203 = vld [vmem:[#allocation5 + $0xbd8] sm:$0xff]
    %v204 = vld [vmem:[#allocation7] sm:$0xf]
    %v206 = vperm.slane %v204, 0
    %v207 = vperm.slane %v204, 1
    %v208 = vperm.slane %v204, 2
    %v209 = vperm.slane %v204, 3
    %v342 = vunpack.c.l.b16 %v76
    %v343 = vunpack.c.h.b16 %v76
    %v344 = vunpack.c.l.b16 %v77
    %v345 = vunpack.c.h.b16 %v77
    %v346 = vunpack.c.l.b16 %v78
    %v347 = vunpack.c.h.b16 %v78
    %v348 = vunpack.c.l.b16 %v79
    %v349 = vunpack.c.h.b16 %v79
    %v350 = vunpack.c.l.b16 %v80
    %v351 = vunpack.c.h.b16 %v80
    %v352 = vunpack.c.l.b16 %v81
    %v353 = vunpack.c.h.b16 %v81
    %v354 = vunpack.c.l.b16 %v82
    %v355 = vunpack.c.h.b16 %v82
    %v356 = vunpack.c.l.b16 %v83
    %v357 = vunpack.c.h.b16 %v83
    %v358 = vunpack.c.l.b16 %v84
    %v359 = vunpack.c.h.b16 %v84
    %v360 = vunpack.c.l.b16 %v85
    %v361 = vunpack.c.h.b16 %v85
    %v362 = vunpack.c.l.b16 %v86
    %v363 = vunpack.c.h.b16 %v86
    %v364 = vunpack.c.l.b16 %v87
    %v365 = vunpack.c.h.b16 %v87
    %v366 = vunpack.c.l.b16 %v88
    %v367 = vunpack.c.h.b16 %v88
    %v368 = vunpack.c.l.b16 %v89
    %v369 = vunpack.c.h.b16 %v89
    %v370 = vunpack.c.l.b16 %v90
    %v371 = vunpack.c.h.b16 %v90
    %v372 = vunpack.c.l.b16 %v91
    %v373 = vunpack.c.h.b16 %v91
    %v374 = vunpack.c.l.b16 %v92
    %v375 = vunpack.c.h.b16 %v92
    %v376 = vunpack.c.l.b16 %v93
    %v377 = vunpack.c.h.b16 %v93
    %v378 = vunpack.c.l.b16 %v94
    %v379 = vunpack.c.h.b16 %v94
    %v380 = vunpack.c.l.b16 %v95
    %v381 = vunpack.c.h.b16 %v95
    %v382 = vunpack.c.l.b16 %v96
    %v383 = vunpack.c.h.b16 %v96
    %v384 = vunpack.c.l.b16 %v97
    %v385 = vunpack.c.h.b16 %v97
    %v386 = vunpack.c.l.b16 %v98
    %v387 = vunpack.c.h.b16 %v98
    %v388 = vunpack.c.l.b16 %v99
    %v389 = vunpack.c.h.b16 %v99
    %v390 = vunpack.c.l.b16 %v100
    %v391 = vunpack.c.h.b16 %v100
    %v392 = vunpack.c.l.b16 %v101
    %v393 = vunpack.c.h.b16 %v101
    %v394 = vunpack.c.l.b16 %v102
    %v395 = vunpack.c.h.b16 %v102
    %v396 = vunpack.c.l.b16 %v103
    %v397 = vunpack.c.h.b16 %v103
    %v398 = vunpack.c.l.b16 %v104
    %v399 = vunpack.c.h.b16 %v104
    %v400 = vunpack.c.l.b16 %v105
    %v401 = vunpack.c.h.b16 %v105
    %v402 = vunpack.c.l.b16 %v106
    %v403 = vunpack.c.h.b16 %v106
    %v404 = vunpack.c.l.b16 %v107
    %v405 = vunpack.c.h.b16 %v107
    %v406 = vunpack.c.l.b16 %v108
    %v407 = vunpack.c.h.b16 %v108
    %v408 = vunpack.c.l.b16 %v109
    %v409 = vunpack.c.h.b16 %v109
    %v410 = vunpack.c.l.b16 %v110
    %v411 = vunpack.c.h.b16 %v110
    %v412 = vunpack.c.l.b16 %v111
    %v413 = vunpack.c.h.b16 %v111
    %v414 = vunpack.c.l.b16 %v112
    %v415 = vunpack.c.h.b16 %v112
    %v416 = vunpack.c.l.b16 %v113
    %v417 = vunpack.c.h.b16 %v113
    %v418 = vunpack.c.l.b16 %v114
    %v419 = vunpack.c.h.b16 %v114
    %v420 = vunpack.c.l.b16 %v115
    %v421 = vunpack.c.h.b16 %v115
    %v422 = vunpack.c.l.b16 %v116
    %v423 = vunpack.c.h.b16 %v116
    %v424 = vunpack.c.l.b16 %v117
    %v425 = vunpack.c.h.b16 %v117
    %v426 = vunpack.c.l.b16 %v118
    %v427 = vunpack.c.h.b16 %v118
    %v428 = vunpack.c.l.b16 %v119
    %v429 = vunpack.c.h.b16 %v119
    %v430 = vunpack.c.l.b16 %v120
    %v431 = vunpack.c.h.b16 %v120
    %v432 = vunpack.c.l.b16 %v121
    %v433 = vunpack.c.h.b16 %v121
    %v434 = vunpack.c.l.b16 %v122
    %v435 = vunpack.c.h.b16 %v122
    %v436 = vunpack.c.l.b16 %v123
    %v437 = vunpack.c.h.b16 %v123
    %v438 = vunpack.c.l.b16 %v124
    %v439 = vunpack.c.h.b16 %v124
    %v440 = vunpack.c.l.b16 %v125
    %v441 = vunpack.c.h.b16 %v125
    %v442 = vunpack.c.l.b16 %v126
    %v443 = vunpack.c.h.b16 %v126
    %v444 = vunpack.c.l.b16 %v127
    %v445 = vunpack.c.h.b16 %v127
    %v446 = vunpack.c.l.b16 %v128
    %v447 = vunpack.c.h.b16 %v128
    %v448 = vunpack.c.l.b16 %v129
    %v449 = vunpack.c.h.b16 %v129
    %v450 = vunpack.c.l.b16 %v130
    %v451 = vunpack.c.h.b16 %v130
    %v452 = vunpack.c.l.b16 %v131
    %v453 = vunpack.c.h.b16 %v131
    %v454 = vunpack.c.l.b16 %v132
    %v455 = vunpack.c.h.b16 %v132
    %v456 = vunpack.c.l.b16 %v133
    %v457 = vunpack.c.h.b16 %v133
    %v458 = vunpack.c.l.b16 %v134
    %v459 = vunpack.c.h.b16 %v134
    %v460 = vunpack.c.l.b16 %v135
    %v461 = vunpack.c.h.b16 %v135
    %v462 = vunpack.c.l.b16 %v136
    %v463 = vunpack.c.h.b16 %v136
    %v464 = vunpack.c.l.b16 %v137
    %v465 = vunpack.c.h.b16 %v137
    %v466 = vunpack.c.l.b16 %v138
    %v467 = vunpack.c.h.b16 %v138
    %v468 = vunpack.c.l.b16 %v139
    %v469 = vunpack.c.h.b16 %v139
    %v470 = vunpack.c.l.b16 %v140
    %v471 = vunpack.c.h.b16 %v140
    %v472 = vunpack.c.l.b16 %v141
    %v473 = vunpack.c.h.b16 %v141
    %v474 = vunpack.c.l.b16 %v142
    %v475 = vunpack.c.h.b16 %v142
    %v476 = vunpack.c.l.b16 %v143
    %v477 = vunpack.c.h.b16 %v143
    %v478 = vunpack.c.l.b16 %v144
    %v479 = vunpack.c.h.b16 %v144
    %v480 = vunpack.c.l.b16 %v145
    %v481 = vunpack.c.h.b16 %v145
    %v482 = vunpack.c.l.b16 %v146
    %v483 = vunpack.c.h.b16 %v146
    %v484 = vunpack.c.l.b16 %v147
    %v485 = vunpack.c.h.b16 %v147
    %v486 = vunpack.c.l.b16 %v148
    %v487 = vunpack.c.h.b16 %v148
    %v488 = vunpack.c.l.b16 %v149
    %v489 = vunpack.c.h.b16 %v149
    %v490 = vunpack.c.l.b16 %v150
    %v491 = vunpack.c.h.b16 %v150
    %v492 = vunpack.c.l.b16 %v151
    %v493 = vunpack.c.h.b16 %v151
    %v494 = vunpack.c.l.b16 %v152
    %v495 = vunpack.c.h.b16 %v152
    %v496 = vunpack.c.l.b16 %v153
    %v497 = vunpack.c.h.b16 %v153
    %v498 = vunpack.c.l.b16 %v154
    %v499 = vunpack.c.h.b16 %v154
    %v500 = vunpack.c.l.b16 %v155
    %v501 = vunpack.c.h.b16 %v155
    %v502 = vunpack.c.l.b16 %v156
    %v503 = vunpack.c.h.b16 %v156
    %v504 = vunpack.c.l.b16 %v157
    %v505 = vunpack.c.h.b16 %v157
    %v506 = vunpack.c.l.b16 %v158
    %v507 = vunpack.c.h.b16 %v158
    %v508 = vunpack.c.l.b16 %v159
    %v509 = vunpack.c.h.b16 %v159
    %v510 = vunpack.c.l.b16 %v160
    %v511 = vunpack.c.h.b16 %v160
    %v512 = vunpack.c.l.b16 %v161
    %v513 = vunpack.c.h.b16 %v161
    %v514 = vunpack.c.l.b16 %v162
    %v515 = vunpack.c.h.b16 %v162
    %v516 = vunpack.c.l.b16 %v163
    %v517 = vunpack.c.h.b16 %v163
    %v518 = vunpack.c.l.b16 %v164
    %v519 = vunpack.c.h.b16 %v164
    %v520 = vunpack.c.l.b16 %v165
    %v521 = vunpack.c.h.b16 %v165
    %v522 = vunpack.c.l.b16 %v166
    %v523 = vunpack.c.h.b16 %v166
    %v524 = vunpack.c.l.b16 %v167
    %v525 = vunpack.c.h.b16 %v167
    %v526 = vunpack.c.l.b16 %v168
    %v527 = vunpack.c.h.b16 %v168
    %v528 = vunpack.c.l.b16 %v169
    %v529 = vunpack.c.h.b16 %v169
    %v530 = vunpack.c.l.b16 %v170
    %v531 = vunpack.c.h.b16 %v170
    %v532 = vunpack.c.l.b16 %v171
    %v533 = vunpack.c.h.b16 %v171
    %v534 = vunpack.c.l.b16 %v172
    %v535 = vunpack.c.h.b16 %v172
    %v536 = vunpack.c.l.b16 %v173
    %v537 = vunpack.c.h.b16 %v173
    %v538 = vunpack.c.l.b16 %v174
    %v539 = vunpack.c.h.b16 %v174
    %v540 = vunpack.c.l.b16 %v175
    %v541 = vunpack.c.h.b16 %v175
    %v542 = vunpack.c.l.b16 %v176
    %v543 = vunpack.c.h.b16 %v176
    %v544 = vunpack.c.l.b16 %v177
    %v545 = vunpack.c.h.b16 %v177
    %v546 = vunpack.c.l.b16 %v178
    %v547 = vunpack.c.h.b16 %v178
    %v548 = vunpack.c.l.b16 %v179
    %v549 = vunpack.c.h.b16 %v179
    %v550 = vunpack.c.l.b16 %v180
    %v551 = vunpack.c.h.b16 %v180
    %v552 = vunpack.c.l.b16 %v181
    %v553 = vunpack.c.h.b16 %v181
    %v554 = vunpack.c.l.b16 %v182
    %v555 = vunpack.c.h.b16 %v182
    %v556 = vunpack.c.l.b16 %v183
    %v557 = vunpack.c.h.b16 %v183
    %v558 = vunpack.c.l.b16 %v184
    %v559 = vunpack.c.h.b16 %v184
    %v560 = vunpack.c.l.b16 %v185
    %v561 = vunpack.c.h.b16 %v185
    %v562 = vunpack.c.l.b16 %v186
    %v563 = vunpack.c.h.b16 %v186
    %v564 = vunpack.c.l.b16 %v187
    %v565 = vunpack.c.h.b16 %v187
    %v566 = vunpack.c.l.b16 %v188
    %v567 = vunpack.c.h.b16 %v188
    %v568 = vunpack.c.l.b16 %v189
    %v569 = vunpack.c.h.b16 %v189
    %v570 = vunpack.c.l.b16 %v190
    %v571 = vunpack.c.h.b16 %v190
    %v572 = vunpack.c.l.b16 %v191
    %v573 = vunpack.c.h.b16 %v191
    %v574 = vunpack.c.l.b16 %v192
    %v575 = vunpack.c.h.b16 %v192
    %v576 = vunpack.c.l.b16 %v193
    %v577 = vunpack.c.h.b16 %v193
    %v578 = vunpack.c.l.b16 %v194
    %v579 = vunpack.c.h.b16 %v194
    %v580 = vunpack.c.l.b16 %v195
    %v581 = vunpack.c.h.b16 %v195
    %v582 = vunpack.c.l.b16 %v196
    %v583 = vunpack.c.h.b16 %v196
    %v584 = vunpack.c.l.b16 %v197
    %v585 = vunpack.c.h.b16 %v197
    %v586 = vunpack.c.l.b16 %v198
    %v587 = vunpack.c.h.b16 %v198
    %v588 = vunpack.c.l.b16 %v199
    %v589 = vunpack.c.h.b16 %v199
    %v590 = vunpack.c.l.b16 %v200
    %v591 = vunpack.c.h.b16 %v200
    %v592 = vunpack.c.l.b16 %v201
    %v593 = vunpack.c.h.b16 %v201
    %v594 = vunpack.c.l.b16 %v202
    %v595 = vunpack.c.h.b16 %v202
    %v596 = vunpack.c.l.b16 %v203
    %v597 = vunpack.c.h.b16 %v203
    %v598 = vpack.c.b16 %v346, %v342
    %v599 = vpack.c.b16 %v347, %v343
    %v600 = vpack.c.b16 %v348, %v344
    %v601 = vpack.c.b16 %v349, %v345
    %v602 = vpack.c.b16 %v354, %v350
    %v603 = vpack.c.b16 %v355, %v351
    %v604 = vpack.c.b16 %v356, %v352
    %v605 = vpack.c.b16 %v357, %v353
    %v606 = vpack.c.b16 %v362, %v358
    %v607 = vpack.c.b16 %v363, %v359
    %v608 = vpack.c.b16 %v364, %v360
    %v609 = vpack.c.b16 %v365, %v361
    %v610 = vpack.c.b16 %v370, %v366
    %v611 = vpack.c.b16 %v371, %v367
    %v612 = vpack.c.b16 %v372, %v368
    %v613 = vpack.c.b16 %v373, %v369
    %v614 = vpack.c.b16 %v378, %v374
    %v615 = vpack.c.b16 %v379, %v375
    %v616 = vpack.c.b16 %v380, %v376
    %v617 = vpack.c.b16 %v381, %v377
    %v618 = vpack.c.b16 %v386, %v382
    %v619 = vpack.c.b16 %v387, %v383
    %v620 = vpack.c.b16 %v388, %v384
    %v621 = vpack.c.b16 %v389, %v385
    %v622 = vpack.c.b16 %v394, %v390
    %v623 = vpack.c.b16 %v395, %v391
    %v624 = vpack.c.b16 %v396, %v392
    %v625 = vpack.c.b16 %v397, %v393
    %v626 = vpack.c.b16 %v402, %v398
    %v627 = vpack.c.b16 %v403, %v399
    %v628 = vpack.c.b16 %v404, %v400
    %v629 = vpack.c.b16 %v405, %v401
    %v630 = vpack.c.b16 %v410, %v406
    %v631 = vpack.c.b16 %v411, %v407
    %v632 = vpack.c.b16 %v412, %v408
    %v633 = vpack.c.b16 %v413, %v409
    %v634 = vpack.c.b16 %v418, %v414
    %v635 = vpack.c.b16 %v419, %v415
    %v636 = vpack.c.b16 %v420, %v416
    %v637 = vpack.c.b16 %v421, %v417
    %v638 = vpack.c.b16 %v426, %v422
    %v639 = vpack.c.b16 %v427, %v423
    %v640 = vpack.c.b16 %v428, %v424
    %v641 = vpack.c.b16 %v429, %v425
    %v642 = vpack.c.b16 %v434, %v430
    %v643 = vpack.c.b16 %v435, %v431
    %v644 = vpack.c.b16 %v436, %v432
    %v645 = vpack.c.b16 %v437, %v433
    %v646 = vpack.c.b16 %v442, %v438
    %v647 = vpack.c.b16 %v443, %v439
    %v648 = vpack.c.b16 %v444, %v440
    %v649 = vpack.c.b16 %v445, %v441
    %v650 = vpack.c.b16 %v450, %v446
    %v651 = vpack.c.b16 %v451, %v447
    %v652 = vpack.c.b16 %v452, %v448
    %v653 = vpack.c.b16 %v453, %v449
    %v654 = vpack.c.b16 %v458, %v454
    %v655 = vpack.c.b16 %v459, %v455
    %v656 = vpack.c.b16 %v460, %v456
    %v657 = vpack.c.b16 %v461, %v457
    %v658 = vpack.c.b16 %v466, %v462
    %v659 = vpack.c.b16 %v467, %v463
    %v660 = vpack.c.b16 %v468, %v464
    %v661 = vpack.c.b16 %v469, %v465
    %v662 = vpack.c.b16 %v474, %v470
    %v663 = vpack.c.b16 %v475, %v471
    %v664 = vpack.c.b16 %v476, %v472
    %v665 = vpack.c.b16 %v477, %v473
    %v666 = vpack.c.b16 %v482, %v478
    %v667 = vpack.c.b16 %v483, %v479
    %v668 = vpack.c.b16 %v484, %v480
    %v669 = vpack.c.b16 %v485, %v481
    %v670 = vpack.c.b16 %v490, %v486
    %v671 = vpack.c.b16 %v491, %v487
    %v672 = vpack.c.b16 %v492, %v488
    %v673 = vpack.c.b16 %v493, %v489
    %v674 = vpack.c.b16 %v498, %v494
    %v675 = vpack.c.b16 %v499, %v495
    %v676 = vpack.c.b16 %v500, %v496
    %v677 = vpack.c.b16 %v501, %v497
    %v678 = vpack.c.b16 %v506, %v502
    %v679 = vpack.c.b16 %v507, %v503
    %v680 = vpack.c.b16 %v508, %v504
    %v681 = vpack.c.b16 %v509, %v505
    %v682 = vpack.c.b16 %v514, %v510
    %v683 = vpack.c.b16 %v515, %v511
    %v684 = vpack.c.b16 %v516, %v512
    %v685 = vpack.c.b16 %v517, %v513
    %v686 = vpack.c.b16 %v522, %v518
    %v687 = vpack.c.b16 %v523, %v519
    %v688 = vpack.c.b16 %v524, %v520
    %v689 = vpack.c.b16 %v525, %v521
    %v690 = vpack.c.b16 %v530, %v526
    %v691 = vpack.c.b16 %v531, %v527
    %v692 = vpack.c.b16 %v532, %v528
    %v693 = vpack.c.b16 %v533, %v529
    %v694 = vpack.c.b16 %v538, %v534
    %v695 = vpack.c.b16 %v539, %v535
    %v696 = vpack.c.b16 %v540, %v536
    %v697 = vpack.c.b16 %v541, %v537
    %v698 = vpack.c.b16 %v546, %v542
    %v699 = vpack.c.b16 %v547, %v543
    %v700 = vpack.c.b16 %v548, %v544
    %v701 = vpack.c.b16 %v549, %v545
    %v702 = vpack.c.b16 %v554, %v550
    %v703 = vpack.c.b16 %v555, %v551
    %v704 = vpack.c.b16 %v556, %v552
    %v705 = vpack.c.b16 %v557, %v553
    %v706 = vpack.c.b16 %v562, %v558
    %v707 = vpack.c.b16 %v563, %v559
    %v708 = vpack.c.b16 %v564, %v560
    %v709 = vpack.c.b16 %v565, %v561
    %v710 = vpack.c.b16 %v570, %v566
    %v711 = vpack.c.b16 %v571, %v567
    %v712 = vpack.c.b16 %v572, %v568
    %v713 = vpack.c.b16 %v573, %v569
    %v714 = vpack.c.b16 %v578, %v574
    %v715 = vpack.c.b16 %v579, %v575
    %v716 = vpack.c.b16 %v580, %v576
    %v717 = vpack.c.b16 %v581, %v577
    %v718 = vpack.c.b16 %v586, %v582
    %v719 = vpack.c.b16 %v587, %v583
    %v720 = vpack.c.b16 %v588, %v584
    %v721 = vpack.c.b16 %v589, %v585
    %v722 = vpack.c.b16 %v594, %v590
    %v723 = vpack.c.b16 %v595, %v591
    %v724 = vpack.c.b16 %v596, %v592
    %v725 = vpack.c.b16 %v597, %v593
    %854 = vmatpush.bf16.msra.mxu0 %v626
    %855 = vmatpush.bf16.msra.mxu0 %v622
    %856 = vmatpush.bf16.msra.mxu0 %v618
    %857 = vmatpush.bf16.msra.mxu0 %v614
    %858 = vmatpush.bf16.msra.mxu0 %v610
    %859 = vmatpush.bf16.msra.mxu0 %v606
    %860 = vmatpush.bf16.msra.mxu0 %v602
    %861 = vmatpush.bf16.msra.mxu0 %v598
    %862 = vmatmul.bf16.gmra.mxu0 %v72
    %v863 = vpop.f32.mrf.mxu0
    %v864 = vadd.f32 %v206, %v863
    %v865 = vpop.f32.mrf.mxu0
    %v866 = vadd.f32 %v206, %v865
    %867 = vdwg.mxu0
    %868 = vmatpush.bf16.msra.mxu0 %v658
    %869 = vmatpush.bf16.msra.mxu0 %v654
    %870 = vmatpush.bf16.msra.mxu0 %v650
    %871 = vmatpush.bf16.msra.mxu0 %v646
    %872 = vmatpush.bf16.msra.mxu0 %v642
    %873 = vmatpush.bf16.msra.mxu0 %v638
    %874 = vmatpush.bf16.msra.mxu0 %v634
    %875 = vmatpush.bf16.msra.mxu0 %v630
    %876 = vmatmul.bf16.gmra.mxu0 %v73
    %v877 = vpop.f32.mrf.mxu0
    %v878 = vadd.f32 %v864, %v877
    %v879 = vpop.f32.mrf.mxu0
    %v880 = vadd.f32 %v866, %v879
    %881 = vdwg.mxu0
    %882 = vmatpush.bf16.msra.mxu0 %v690
    %883 = vmatpush.bf16.msra.mxu0 %v686
    %884 = vmatpush.bf16.msra.mxu0 %v682
    %885 = vmatpush.bf16.msra.mxu0 %v678
    %886 = vmatpush.bf16.msra.mxu0 %v674
    %887 = vmatpush.bf16.msra.mxu0 %v670
    %888 = vmatpush.bf16.msra.mxu0 %v666
    %889 = vmatpush.bf16.msra.mxu0 %v662
    %890 = vmatmul.bf16.gmra.mxu0 %v74
    %v891 = vpop.f32.mrf.mxu0
    %v892 = vadd.f32 %v878, %v891
    %v893 = vpop.f32.mrf.mxu0
    %v894 = vadd.f32 %v880, %v893
    %895 = vdwg.mxu0
    %896 = vmatpush.bf16.msra.mxu0 %v722
    %897 = vmatpush.bf16.msra.mxu0 %v718
    %898 = vmatpush.bf16.msra.mxu0 %v714
    %899 = vmatpush.bf16.msra.mxu0 %v710
    %900 = vmatpush.bf16.msra.mxu0 %v706
    %901 = vmatpush.bf16.msra.mxu0 %v702
    %902 = vmatpush.bf16.msra.mxu0 %v698
    %903 = vmatpush.bf16.msra.mxu0 %v694
    %904 = vmatmul.bf16.gmra.mxu0 %v75
    %v905 = vpop.f32.mrf.mxu0
    %v906 = vadd.f32 %v892, %v905
    %v907 = vpop.f32.mrf.mxu0
    %v908 = vadd.f32 %v894, %v907
    %909 = vdwg.mxu0
    %910 = vmatpush.bf16.msra.mxu0 %v627
    %911 = vmatpush.bf16.msra.mxu0 %v623
    %912 = vmatpush.bf16.msra.mxu0 %v619
    %913 = vmatpush.bf16.msra.mxu0 %v615
    %914 = vmatpush.bf16.msra.mxu0 %v611
    %915 = vmatpush.bf16.msra.mxu0 %v607
    %916 = vmatpush.bf16.msra.mxu0 %v603
    %917 = vmatpush.bf16.msra.mxu0 %v599
    %918 = vmatmul.bf16.gmra.mxu0 %v72
    %v919 = vpop.f32.mrf.mxu0
    %v920 = vadd.f32 %v207, %v919
    %v921 = vpop.f32.mrf.mxu0
    %v922 = vadd.f32 %v207, %v921
    %923 = vdwg.mxu0
    %924 = vmatpush.bf16.msra.mxu0 %v659
    %925 = vmatpush.bf16.msra.mxu0 %v655
    %926 = vmatpush.bf16.msra.mxu0 %v651
    %927 = vmatpush.bf16.msra.mxu0 %v647
    %928 = vmatpush.bf16.msra.mxu0 %v643
    %929 = vmatpush.bf16.msra.mxu0 %v639
    %930 = vmatpush.bf16.msra.mxu0 %v635
    %931 = vmatpush.bf16.msra.mxu0 %v631
    %932 = vmatmul.bf16.gmra.mxu0 %v73
    %v933 = vpop.f32.mrf.mxu0
    %v934 = vadd.f32 %v920, %v933
    %v935 = vpop.f32.mrf.mxu0
    %v936 = vadd.f32 %v922, %v935
    %937 = vdwg.mxu0
    %938 = vmatpush.bf16.msra.mxu0 %v691
    %939 = vmatpush.bf16.msra.mxu0 %v687
    %940 = vmatpush.bf16.msra.mxu0 %v683
    %941 = vmatpush.bf16.msra.mxu0 %v679
    %942 = vmatpush.bf16.msra.mxu0 %v675
    %943 = vmatpush.bf16.msra.mxu0 %v671
    %944 = vmatpush.bf16.msra.mxu0 %v667
    %945 = vmatpush.bf16.msra.mxu0 %v663
    %946 = vmatmul.bf16.gmra.mxu0 %v74
    %v947 = vpop.f32.mrf.mxu0
    %v948 = vadd.f32 %v934, %v947
    %v949 = vpop.f32.mrf.mxu0
    %v950 = vadd.f32 %v936, %v949
    %951 = vdwg.mxu0
    %952 = vmatpush.bf16.msra.mxu0 %v723
    %953 = vmatpush.bf16.msra.mxu0 %v719
    %954 = vmatpush.bf16.msra.mxu0 %v715
    %955 = vmatpush.bf16.msra.mxu0 %v711
    %956 = vmatpush.bf16.msra.mxu0 %v707
    %957 = vmatpush.bf16.msra.mxu0 %v703
    %958 = vmatpush.bf16.msra.mxu0 %v699
    %959 = vmatpush.bf16.msra.mxu0 %v695
    %960 = vmatmul.bf16.gmra.mxu0 %v75
    %v961 = vpop.f32.mrf.mxu0
    %v962 = vadd.f32 %v948, %v961
    %v963 = vpop.f32.mrf.mxu0
    %v964 = vadd.f32 %v950, %v963
    %965 = vdwg.mxu0
    %966 = vmatpush.bf16.msra.mxu0 %v628
    %967 = vmatpush.bf16.msra.mxu0 %v624
    %968 = vmatpush.bf16.msra.mxu0 %v620
    %969 = vmatpush.bf16.msra.mxu0 %v616
    %970 = vmatpush.bf16.msra.mxu0 %v612
    %971 = vmatpush.bf16.msra.mxu0 %v608
    %972 = vmatpush.bf16.msra.mxu0 %v604
    %973 = vmatpush.bf16.msra.mxu0 %v600
    %974 = vmatmul.bf16.gmra.mxu0 %v72
    %v975 = vpop.f32.mrf.mxu0
    %v976 = vadd.f32 %v208, %v975
    %v977 = vpop.f32.mrf.mxu0
    %v978 = vadd.f32 %v208, %v977
    %979 = vdwg.mxu0
    %980 = vmatpush.bf16.msra.mxu0 %v660
    %981 = vmatpush.bf16.msra.mxu0 %v656
    %982 = vmatpush.bf16.msra.mxu0 %v652
    %983 = vmatpush.bf16.msra.mxu0 %v648
    %984 = vmatpush.bf16.msra.mxu0 %v644
    %985 = vmatpush.bf16.msra.mxu0 %v640
    %986 = vmatpush.bf16.msra.mxu0 %v636
    %987 = vmatpush.bf16.msra.mxu0 %v632
    %988 = vmatmul.bf16.gmra.mxu0 %v73
    %v989 = vpop.f32.mrf.mxu0
    %v990 = vadd.f32 %v976, %v989
    %v991 = vpop.f32.mrf.mxu0
    %v992 = vadd.f32 %v978, %v991
    %993 = vdwg.mxu0
    %994 = vmatpush.bf16.msra.mxu0 %v692
    %995 = vmatpush.bf16.msra.mxu0 %v688
    %996 = vmatpush.bf16.msra.mxu0 %v684
    %997 = vmatpush.bf16.msra.mxu0 %v680
    %998 = vmatpush.bf16.msra.mxu0 %v676
    %999 = vmatpush.bf16.msra.mxu0 %v672
    %1000 = vmatpush.bf16.msra.mxu0 %v668
    %1001 = vmatpush.bf16.msra.mxu0 %v664
    %1002 = vmatmul.bf16.gmra.mxu0 %v74
    %v1003 = vpop.f32.mrf.mxu0
    %v1004 = vadd.f32 %v990, %v1003
    %v1005 = vpop.f32.mrf.mxu0
    %v1006 = vadd.f32 %v992, %v1005
    %1007 = vdwg.mxu0
    %1008 = vmatpush.bf16.msra.mxu0 %v724
    %1009 = vmatpush.bf16.msra.mxu0 %v720
    %1010 = vmatpush.bf16.msra.mxu0 %v716
    %1011 = vmatpush.bf16.msra.mxu0 %v712
    %1012 = vmatpush.bf16.msra.mxu0 %v708
    %1013 = vmatpush.bf16.msra.mxu0 %v704
    %1014 = vmatpush.bf16.msra.mxu0 %v700
    %1015 = vmatpush.bf16.msra.mxu0 %v696
    %1016 = vmatmul.bf16.gmra.mxu0 %v75
    %v1017 = vpop.f32.mrf.mxu0
    %v1018 = vadd.f32 %v1004, %v1017
    %v1019 = vpop.f32.mrf.mxu0
    %v1020 = vadd.f32 %v1006, %v1019
    %1021 = vdwg.mxu0
    %1022 = vmatpush.bf16.msra.mxu0 %v629
    %1023 = vmatpush.bf16.msra.mxu0 %v625
    %1024 = vmatpush.bf16.msra.mxu0 %v621
    %1025 = vmatpush.bf16.msra.mxu0 %v617
    %1026 = vmatpush.bf16.msra.mxu0 %v613
    %1027 = vmatpush.bf16.msra.mxu0 %v609
    %1028 = vmatpush.bf16.msra.mxu0 %v605
    %1029 = vmatpush.bf16.msra.mxu0 %v601
    %1030 = vmatmul.bf16.gmra.mxu0 %v72
    %v1031 = vpop.f32.mrf.mxu0
    %v1032 = vadd.f32 %v209, %v1031
    %v1033 = vpop.f32.mrf.mxu0
    %v1034 = vadd.f32 %v209, %v1033
    %1035 = vdwg.mxu0
    %1036 = vmatpush.bf16.msra.mxu0 %v661
    %1037 = vmatpush.bf16.msra.mxu0 %v657
    %1038 = vmatpush.bf16.msra.mxu0 %v653
    %1039 = vmatpush.bf16.msra.mxu0 %v649
    %1040 = vmatpush.bf16.msra.mxu0 %v645
    %1041 = vmatpush.bf16.msra.mxu0 %v641
    %1042 = vmatpush.bf16.msra.mxu0 %v637
    %1043 = vmatpush.bf16.msra.mxu0 %v633
    %1044 = vmatmul.bf16.gmra.mxu0 %v73
    %v1045 = vpop.f32.mrf.mxu0
    %v1046 = vadd.f32 %v1032, %v1045
    %v1047 = vpop.f32.mrf.mxu0
    %v1048 = vadd.f32 %v1034, %v1047
    %1049 = vdwg.mxu0
    %1050 = vmatpush.bf16.msra.mxu0 %v693
    %1051 = vmatpush.bf16.msra.mxu0 %v689
    %1052 = vmatpush.bf16.msra.mxu0 %v685
    %1053 = vmatpush.bf16.msra.mxu0 %v681
    %1054 = vmatpush.bf16.msra.mxu0 %v677
    %1055 = vmatpush.bf16.msra.mxu0 %v673
    %1056 = vmatpush.bf16.msra.mxu0 %v669
    %1057 = vmatpush.bf16.msra.mxu0 %v665
    %1058 = vmatmul.bf16.gmra.mxu0 %v74
    %v1059 = vpop.f32.mrf.mxu0
    %v1060 = vadd.f32 %v1046, %v1059
    %v1061 = vpop.f32.mrf.mxu0
    %v1062 = vadd.f32 %v1048, %v1061
    %1063 = vdwg.mxu0
    %1064 = vmatpush.bf16.msra.mxu0 %v725
    %1065 = vmatpush.bf16.msra.mxu0 %v721
    %1066 = vmatpush.bf16.msra.mxu0 %v717
    %1067 = vmatpush.bf16.msra.mxu0 %v713
    %1068 = vmatpush.bf16.msra.mxu0 %v709
    %1069 = vmatpush.bf16.msra.mxu0 %v705
    %1070 = vmatpush.bf16.msra.mxu0 %v701
    %1071 = vmatpush.bf16.msra.mxu0 %v697
    %1072 = vmatmul.bf16.gmra.mxu0 %v75
    %v1073 = vpop.f32.mrf.mxu0
    %v1074 = vadd.f32 %v1060, %v1073
    %v1075 = vpop.f32.mrf.mxu0
    %v1076 = vadd.f32 %v1062, %v1075
    %1077 = vdwg.mxu0
    %1078 = vst [vmem:[#allocation8] sm:$0xff] %v906
    %1079 = vst [vmem:[#allocation8 + $0x8] sm:$0xff] %v962
    %1080 = vst [vmem:[#allocation8 + $0x10] sm:$0xff] %v1018
    %1081 = vst [vmem:[#allocation8 + $0x18] sm:$0xff] %v1074
    %1082 = vst [vmem:[#allocation8 + $0x20] sm:$0xff] %v908
    %1083 = vst [vmem:[#allocation8 + $0x28] sm:$0xff] %v964
    %1084 = vst [vmem:[#allocation8 + $0x30] sm:$0xff] %v1020
    %1085 = vst [vmem:[#allocation8 + $0x38] sm:$0xff] %v1076
    %v1086 = vld [vmem:[#allocation5 + $0x10] sm:$0xff]
    %v1087 = vld [vmem:[#allocation5 + $0x18] sm:$0xff]
    %v1088 = vld [vmem:[#allocation5 + $0x40] sm:$0xff]
    %v1089 = vld [vmem:[#allocation5 + $0x48] sm:$0xff]
    %v1090 = vld [vmem:[#allocation5 + $0x70] sm:$0xff]
    %v1091 = vld [vmem:[#allocation5 + $0x78] sm:$0xff]
    %v1092 = vld [vmem:[#allocation5 + $0xa0] sm:$0xff]
    %v1093 = vld [vmem:[#allocation5 + $0xa8] sm:$0xff]
    %v1094 = vld [vmem:[#allocation5 + $0xd0] sm:$0xff]
    %v1095 = vld [vmem:[#allocation5 + $0xd8] sm:$0xff]
    %v1096 = vld [vmem:[#allocation5 + $0x100] sm:$0xff]
    %v1097 = vld [vmem:[#allocation5 + $0x108] sm:$0xff]
    %v1098 = vld [vmem:[#allocation5 + $0x130] sm:$0xff]
    %v1099 = vld [vmem:[#allocation5 + $0x138] sm:$0xff]
    %v1100 = vld [vmem:[#allocation5 + $0x160] sm:$0xff]
    %v1101 = vld [vmem:[#allocation5 + $0x168] sm:$0xff]
    %v1102 = vld [vmem:[#allocation5 + $0x190] sm:$0xff]
    %v1103 = vld [vmem:[#allocation5 + $0x198] sm:$0xff]
    %v1104 = vld [vmem:[#allocation5 + $0x1c0] sm:$0xff]
    %v1105 = vld [vmem:[#allocation5 + $0x1c8] sm:$0xff]
    %v1106 = vld [vmem:[#allocation5 + $0x1f0] sm:$0xff]
    %v1107 = vld [vmem:[#allocation5 + $0x1f8] sm:$0xff]
    %v1108 = vld [vmem:[#allocation5 + $0x220] sm:$0xff]
    %v1109 = vld [vmem:[#allocation5 + $0x228] sm:$0xff]
    %v1110 = vld [vmem:[#allocation5 + $0x250] sm:$0xff]
    %v1111 = vld [vmem:[#allocation5 + $0x258] sm:$0xff]
    %v1112 = vld [vmem:[#allocation5 + $0x280] sm:$0xff]
    %v1113 = vld [vmem:[#allocation5 + $0x288] sm:$0xff]
    %v1114 = vld [vmem:[#allocation5 + $0x2b0] sm:$0xff]
    %v1115 = vld [vmem:[#allocation5 + $0x2b8] sm:$0xff]
    %v1116 = vld [vmem:[#allocation5 + $0x2e0] sm:$0xff]
    %v1117 = vld [vmem:[#allocation5 + $0x2e8] sm:$0xff]
    %v1118 = vld [vmem:[#allocation5 + $0x310] sm:$0xff]
    %v1119 = vld [vmem:[#allocation5 + $0x318] sm:$0xff]
    %v1120 = vld [vmem:[#allocation5 + $0x340] sm:$0xff]
    %v1121 = vld [vmem:[#allocation5 + $0x348] sm:$0xff]
    %v1122 = vld [vmem:[#allocation5 + $0x370] sm:$0xff]
    %v1123 = vld [vmem:[#allocation5 + $0x378] sm:$0xff]
    %v1124 = vld [vmem:[#allocation5 + $0x3a0] sm:$0xff]
    %v1125 = vld [vmem:[#allocation5 + $0x3a8] sm:$0xff]
    %v1126 = vld [vmem:[#allocation5 + $0x3d0] sm:$0xff]
    %v1127 = vld [vmem:[#allocation5 + $0x3d8] sm:$0xff]
    %v1128 = vld [vmem:[#allocation5 + $0x400] sm:$0xff]
    %v1129 = vld [vmem:[#allocation5 + $0x408] sm:$0xff]
    %v1130 = vld [vmem:[#allocation5 + $0x430] sm:$0xff]
    %v1131 = vld [vmem:[#allocation5 + $0x438] sm:$0xff]
    %v1132 = vld [vmem:[#allocation5 + $0x460] sm:$0xff]
    %v1133 = vld [vmem:[#allocation5 + $0x468] sm:$0xff]
    %v1134 = vld [vmem:[#allocation5 + $0x490] sm:$0xff]
    %v1135 = vld [vmem:[#allocation5 + $0x498] sm:$0xff]
    %v1136 = vld [vmem:[#allocation5 + $0x4c0] sm:$0xff]
    %v1137 = vld [vmem:[#allocation5 + $0x4c8] sm:$0xff]
    %v1138 = vld [vmem:[#allocation5 + $0x4f0] sm:$0xff]
    %v1139 = vld [vmem:[#allocation5 + $0x4f8] sm:$0xff]
    %v1140 = vld [vmem:[#allocation5 + $0x520] sm:$0xff]
    %v1141 = vld [vmem:[#allocation5 + $0x528] sm:$0xff]
    %v1142 = vld [vmem:[#allocation5 + $0x550] sm:$0xff]
    %v1143 = vld [vmem:[#allocation5 + $0x558] sm:$0xff]
    %v1144 = vld [vmem:[#allocation5 + $0x580] sm:$0xff]
    %v1145 = vld [vmem:[#allocation5 + $0x588] sm:$0xff]
    %v1146 = vld [vmem:[#allocation5 + $0x5b0] sm:$0xff]
    %v1147 = vld [vmem:[#allocation5 + $0x5b8] sm:$0xff]
    %v1148 = vld [vmem:[#allocation5 + $0x5e0] sm:$0xff]
    %v1149 = vld [vmem:[#allocation5 + $0x5e8] sm:$0xff]
    %v1150 = vld [vmem:[#allocation5 + $0x610] sm:$0xff]
    %v1151 = vld [vmem:[#allocation5 + $0x618] sm:$0xff]
    %v1152 = vld [vmem:[#allocation5 + $0x640] sm:$0xff]
    %v1153 = vld [vmem:[#allocation5 + $0x648] sm:$0xff]
    %v1154 = vld [vmem:[#allocation5 + $0x670] sm:$0xff]
    %v1155 = vld [vmem:[#allocation5 + $0x678] sm:$0xff]
    %v1156 = vld [vmem:[#allocation5 + $0x6a0] sm:$0xff]
    %v1157 = vld [vmem:[#allocation5 + $0x6a8] sm:$0xff]
    %v1158 = vld [vmem:[#allocation5 + $0x6d0] sm:$0xff]
    %v1159 = vld [vmem:[#allocation5 + $0x6d8] sm:$0xff]
    %v1160 = vld [vmem:[#allocation5 + $0x700] sm:$0xff]
    %v1161 = vld [vmem:[#allocation5 + $0x708] sm:$0xff]
    %v1162 = vld [vmem:[#allocation5 + $0x730] sm:$0xff]
    %v1163 = vld [vmem:[#allocation5 + $0x738] sm:$0xff]
    %v1164 = vld [vmem:[#allocation5 + $0x760] sm:$0xff]
    %v1165 = vld [vmem:[#allocation5 + $0x768] sm:$0xff]
    %v1166 = vld [vmem:[#allocation5 + $0x790] sm:$0xff]
    %v1167 = vld [vmem:[#allocation5 + $0x798] sm:$0xff]
    %v1168 = vld [vmem:[#allocation5 + $0x7c0] sm:$0xff]
    %v1169 = vld [vmem:[#allocation5 + $0x7c8] sm:$0xff]
    %v1170 = vld [vmem:[#allocation5 + $0x7f0] sm:$0xff]
    %v1171 = vld [vmem:[#allocation5 + $0x7f8] sm:$0xff]
    %v1172 = vld [vmem:[#allocation5 + $0x820] sm:$0xff]
    %v1173 = vld [vmem:[#allocation5 + $0x828] sm:$0xff]
    %v1174 = vld [vmem:[#allocation5 + $0x850] sm:$0xff]
    %v1175 = vld [vmem:[#allocation5 + $0x858] sm:$0xff]
    %v1176 = vld [vmem:[#allocation5 + $0x880] sm:$0xff]
    %v1177 = vld [vmem:[#allocation5 + $0x888] sm:$0xff]
    %v1178 = vld [vmem:[#allocation5 + $0x8b0] sm:$0xff]
    %v1179 = vld [vmem:[#allocation5 + $0x8b8] sm:$0xff]
    %v1180 = vld [vmem:[#allocation5 + $0x8e0] sm:$0xff]
    %v1181 = vld [vmem:[#allocation5 + $0x8e8] sm:$0xff]
    %v1182 = vld [vmem:[#allocation5 + $0x910] sm:$0xff]
    %v1183 = vld [vmem:[#allocation5 + $0x918] sm:$0xff]
    %v1184 = vld [vmem:[#allocation5 + $0x940] sm:$0xff]
    %v1185 = vld [vmem:[#allocation5 + $0x948] sm:$0xff]
    %v1186 = vld [vmem:[#allocation5 + $0x970] sm:$0xff]
    %v1187 = vld [vmem:[#allocation5 + $0x978] sm:$0xff]
    %v1188 = vld [vmem:[#allocation5 + $0x9a0] sm:$0xff]
    %v1189 = vld [vmem:[#allocation5 + $0x9a8] sm:$0xff]
    %v1190 = vld [vmem:[#allocation5 + $0x9d0] sm:$0xff]
    %v1191 = vld [vmem:[#allocation5 + $0x9d8] sm:$0xff]
    %v1192 = vld [vmem:[#allocation5 + $0xa00] sm:$0xff]
    %v1193 = vld [vmem:[#allocation5 + $0xa08] sm:$0xff]
    %v1194 = vld [vmem:[#allocation5 + $0xa30] sm:$0xff]
    %v1195 = vld [vmem:[#allocation5 + $0xa38] sm:$0xff]
    %v1196 = vld [vmem:[#allocation5 + $0xa60] sm:$0xff]
    %v1197 = vld [vmem:[#allocation5 + $0xa68] sm:$0xff]
    %v1198 = vld [vmem:[#allocation5 + $0xa90] sm:$0xff]
    %v1199 = vld [vmem:[#allocation5 + $0xa98] sm:$0xff]
    %v1200 = vld [vmem:[#allocation5 + $0xac0] sm:$0xff]
    %v1201 = vld [vmem:[#allocation5 + $0xac8] sm:$0xff]
    %v1202 = vld [vmem:[#allocation5 + $0xaf0] sm:$0xff]
    %v1203 = vld [vmem:[#allocation5 + $0xaf8] sm:$0xff]
    %v1204 = vld [vmem:[#allocation5 + $0xb20] sm:$0xff]
    %v1205 = vld [vmem:[#allocation5 + $0xb28] sm:$0xff]
    %v1206 = vld [vmem:[#allocation5 + $0xb50] sm:$0xff]
    %v1207 = vld [vmem:[#allocation5 + $0xb58] sm:$0xff]
    %v1208 = vld [vmem:[#allocation5 + $0xb80] sm:$0xff]
    %v1209 = vld [vmem:[#allocation5 + $0xb88] sm:$0xff]
    %v1210 = vld [vmem:[#allocation5 + $0xbb0] sm:$0xff]
    %v1211 = vld [vmem:[#allocation5 + $0xbb8] sm:$0xff]
    %v1212 = vld [vmem:[#allocation5 + $0xbe0] sm:$0xff]
    %v1213 = vld [vmem:[#allocation5 + $0xbe8] sm:$0xff]
    %v1214 = vld [vmem:[#allocation7 + $0x4] sm:$0xf]
    %v1216 = vperm.slane %v1214, 0
    %v1217 = vperm.slane %v1214, 1
    %v1218 = vperm.slane %v1214, 2
    %v1219 = vperm.slane %v1214, 3
    %v1352 = vunpack.c.l.b16 %v1086
    %v1353 = vunpack.c.h.b16 %v1086
    %v1354 = vunpack.c.l.b16 %v1087
    %v1355 = vunpack.c.h.b16 %v1087
    %v1356 = vunpack.c.l.b16 %v1088
    %v1357 = vunpack.c.h.b16 %v1088
    %v1358 = vunpack.c.l.b16 %v1089
    %v1359 = vunpack.c.h.b16 %v1089
    %v1360 = vunpack.c.l.b16 %v1090
    %v1361 = vunpack.c.h.b16 %v1090
    %v1362 = vunpack.c.l.b16 %v1091
    %v1363 = vunpack.c.h.b16 %v1091
    %v1364 = vunpack.c.l.b16 %v1092
    %v1365 = vunpack.c.h.b16 %v1092
    %v1366 = vunpack.c.l.b16 %v1093
    %v1367 = vunpack.c.h.b16 %v1093
    %v1368 = vunpack.c.l.b16 %v1094
    %v1369 = vunpack.c.h.b16 %v1094
    %v1370 = vunpack.c.l.b16 %v1095
    %v1371 = vunpack.c.h.b16 %v1095
    %v1372 = vunpack.c.l.b16 %v1096
    %v1373 = vunpack.c.h.b16 %v1096
    %v1374 = vunpack.c.l.b16 %v1097
    %v1375 = vunpack.c.h.b16 %v1097
    %v1376 = vunpack.c.l.b16 %v1098
    %v1377 = vunpack.c.h.b16 %v1098
    %v1378 = vunpack.c.l.b16 %v1099
    %v1379 = vunpack.c.h.b16 %v1099
    %v1380 = vunpack.c.l.b16 %v1100
    %v1381 = vunpack.c.h.b16 %v1100
    %v1382 = vunpack.c.l.b16 %v1101
    %v1383 = vunpack.c.h.b16 %v1101
    %v1384 = vunpack.c.l.b16 %v1102
    %v1385 = vunpack.c.h.b16 %v1102
    %v1386 = vunpack.c.l.b16 %v1103
    %v1387 = vunpack.c.h.b16 %v1103
    %v1388 = vunpack.c.l.b16 %v1104
    %v1389 = vunpack.c.h.b16 %v1104
    %v1390 = vunpack.c.l.b16 %v1105
    %v1391 = vunpack.c.h.b16 %v1105
    %v1392 = vunpack.c.l.b16 %v1106
    %v1393 = vunpack.c.h.b16 %v1106
    %v1394 = vunpack.c.l.b16 %v1107
    %v1395 = vunpack.c.h.b16 %v1107
    %v1396 = vunpack.c.l.b16 %v1108
    %v1397 = vunpack.c.h.b16 %v1108
    %v1398 = vunpack.c.l.b16 %v1109
    %v1399 = vunpack.c.h.b16 %v1109
    %v1400 = vunpack.c.l.b16 %v1110
    %v1401 = vunpack.c.h.b16 %v1110
    %v1402 = vunpack.c.l.b16 %v1111
    %v1403 = vunpack.c.h.b16 %v1111
    %v1404 = vunpack.c.l.b16 %v1112
    %v1405 = vunpack.c.h.b16 %v1112
    %v1406 = vunpack.c.l.b16 %v1113
    %v1407 = vunpack.c.h.b16 %v1113
    %v1408 = vunpack.c.l.b16 %v1114
    %v1409 = vunpack.c.h.b16 %v1114
    %v1410 = vunpack.c.l.b16 %v1115
    %v1411 = vunpack.c.h.b16 %v1115
    %v1412 = vunpack.c.l.b16 %v1116
    %v1413 = vunpack.c.h.b16 %v1116
    %v1414 = vunpack.c.l.b16 %v1117
    %v1415 = vunpack.c.h.b16 %v1117
    %v1416 = vunpack.c.l.b16 %v1118
    %v1417 = vunpack.c.h.b16 %v1118
    %v1418 = vunpack.c.l.b16 %v1119
    %v1419 = vunpack.c.h.b16 %v1119
    %v1420 = vunpack.c.l.b16 %v1120
    %v1421 = vunpack.c.h.b16 %v1120
    %v1422 = vunpack.c.l.b16 %v1121
    %v1423 = vunpack.c.h.b16 %v1121
    %v1424 = vunpack.c.l.b16 %v1122
    %v1425 = vunpack.c.h.b16 %v1122
    %v1426 = vunpack.c.l.b16 %v1123
    %v1427 = vunpack.c.h.b16 %v1123
    %v1428 = vunpack.c.l.b16 %v1124
    %v1429 = vunpack.c.h.b16 %v1124
    %v1430 = vunpack.c.l.b16 %v1125
    %v1431 = vunpack.c.h.b16 %v1125
    %v1432 = vunpack.c.l.b16 %v1126
    %v1433 = vunpack.c.h.b16 %v1126
    %v1434 = vunpack.c.l.b16 %v1127
    %v1435 = vunpack.c.h.b16 %v1127
    %v1436 = vunpack.c.l.b16 %v1128
    %v1437 = vunpack.c.h.b16 %v1128
    %v1438 = vunpack.c.l.b16 %v1129
    %v1439 = vunpack.c.h.b16 %v1129
    %v1440 = vunpack.c.l.b16 %v1130
    %v1441 = vunpack.c.h.b16 %v1130
    %v1442 = vunpack.c.l.b16 %v1131
    %v1443 = vunpack.c.h.b16 %v1131
    %v1444 = vunpack.c.l.b16 %v1132
    %v1445 = vunpack.c.h.b16 %v1132
    %v1446 = vunpack.c.l.b16 %v1133
    %v1447 = vunpack.c.h.b16 %v1133
    %v1448 = vunpack.c.l.b16 %v1134
    %v1449 = vunpack.c.h.b16 %v1134
    %v1450 = vunpack.c.l.b16 %v1135
    %v1451 = vunpack.c.h.b16 %v1135
    %v1452 = vunpack.c.l.b16 %v1136
    %v1453 = vunpack.c.h.b16 %v1136
    %v1454 = vunpack.c.l.b16 %v1137
    %v1455 = vunpack.c.h.b16 %v1137
    %v1456 = vunpack.c.l.b16 %v1138
    %v1457 = vunpack.c.h.b16 %v1138
    %v1458 = vunpack.c.l.b16 %v1139
    %v1459 = vunpack.c.h.b16 %v1139
    %v1460 = vunpack.c.l.b16 %v1140
    %v1461 = vunpack.c.h.b16 %v1140
    %v1462 = vunpack.c.l.b16 %v1141
    %v1463 = vunpack.c.h.b16 %v1141
    %v1464 = vunpack.c.l.b16 %v1142
    %v1465 = vunpack.c.h.b16 %v1142
    %v1466 = vunpack.c.l.b16 %v1143
    %v1467 = vunpack.c.h.b16 %v1143
    %v1468 = vunpack.c.l.b16 %v1144
    %v1469 = vunpack.c.h.b16 %v1144
    %v1470 = vunpack.c.l.b16 %v1145
    %v1471 = vunpack.c.h.b16 %v1145
    %v1472 = vunpack.c.l.b16 %v1146
    %v1473 = vunpack.c.h.b16 %v1146
    %v1474 = vunpack.c.l.b16 %v1147
    %v1475 = vunpack.c.h.b16 %v1147
    %v1476 = vunpack.c.l.b16 %v1148
    %v1477 = vunpack.c.h.b16 %v1148
    %v1478 = vunpack.c.l.b16 %v1149
    %v1479 = vunpack.c.h.b16 %v1149
    %v1480 = vunpack.c.l.b16 %v1150
    %v1481 = vunpack.c.h.b16 %v1150
    %v1482 = vunpack.c.l.b16 %v1151
    %v1483 = vunpack.c.h.b16 %v1151
    %v1484 = vunpack.c.l.b16 %v1152
    %v1485 = vunpack.c.h.b16 %v1152
    %v1486 = vunpack.c.l.b16 %v1153
    %v1487 = vunpack.c.h.b16 %v1153
    %v1488 = vunpack.c.l.b16 %v1154
    %v1489 = vunpack.c.h.b16 %v1154
    %v1490 = vunpack.c.l.b16 %v1155
    %v1491 = vunpack.c.h.b16 %v1155
    %v1492 = vunpack.c.l.b16 %v1156
    %v1493 = vunpack.c.h.b16 %v1156
    %v1494 = vunpack.c.l.b16 %v1157
    %v1495 = vunpack.c.h.b16 %v1157
    %v1496 = vunpack.c.l.b16 %v1158
    %v1497 = vunpack.c.h.b16 %v1158
    %v1498 = vunpack.c.l.b16 %v1159
    %v1499 = vunpack.c.h.b16 %v1159
    %v1500 = vunpack.c.l.b16 %v1160
    %v1501 = vunpack.c.h.b16 %v1160
    %v1502 = vunpack.c.l.b16 %v1161
    %v1503 = vunpack.c.h.b16 %v1161
    %v1504 = vunpack.c.l.b16 %v1162
    %v1505 = vunpack.c.h.b16 %v1162
    %v1506 = vunpack.c.l.b16 %v1163
    %v1507 = vunpack.c.h.b16 %v1163
    %v1508 = vunpack.c.l.b16 %v1164
    %v1509 = vunpack.c.h.b16 %v1164
    %v1510 = vunpack.c.l.b16 %v1165
    %v1511 = vunpack.c.h.b16 %v1165
    %v1512 = vunpack.c.l.b16 %v1166
    %v1513 = vunpack.c.h.b16 %v1166
    %v1514 = vunpack.c.l.b16 %v1167
    %v1515 = vunpack.c.h.b16 %v1167
    %v1516 = vunpack.c.l.b16 %v1168
    %v1517 = vunpack.c.h.b16 %v1168
    %v1518 = vunpack.c.l.b16 %v1169
    %v1519 = vunpack.c.h.b16 %v1169
    %v1520 = vunpack.c.l.b16 %v1170
    %v1521 = vunpack.c.h.b16 %v1170
    %v1522 = vunpack.c.l.b16 %v1171
    %v1523 = vunpack.c.h.b16 %v1171
    %v1524 = vunpack.c.l.b16 %v1172
    %v1525 = vunpack.c.h.b16 %v1172
    %v1526 = vunpack.c.l.b16 %v1173
    %v1527 = vunpack.c.h.b16 %v1173
    %v1528 = vunpack.c.l.b16 %v1174
    %v1529 = vunpack.c.h.b16 %v1174
    %v1530 = vunpack.c.l.b16 %v1175
    %v1531 = vunpack.c.h.b16 %v1175
    %v1532 = vunpack.c.l.b16 %v1176
    %v1533 = vunpack.c.h.b16 %v1176
    %v1534 = vunpack.c.l.b16 %v1177
    %v1535 = vunpack.c.h.b16 %v1177
    %v1536 = vunpack.c.l.b16 %v1178
    %v1537 = vunpack.c.h.b16 %v1178
    %v1538 = vunpack.c.l.b16 %v1179
    %v1539 = vunpack.c.h.b16 %v1179
    %v1540 = vunpack.c.l.b16 %v1180
    %v1541 = vunpack.c.h.b16 %v1180
    %v1542 = vunpack.c.l.b16 %v1181
    %v1543 = vunpack.c.h.b16 %v1181
    %v1544 = vunpack.c.l.b16 %v1182
    %v1545 = vunpack.c.h.b16 %v1182
    %v1546 = vunpack.c.l.b16 %v1183
    %v1547 = vunpack.c.h.b16 %v1183
    %v1548 = vunpack.c.l.b16 %v1184
    %v1549 = vunpack.c.h.b16 %v1184
    %v1550 = vunpack.c.l.b16 %v1185
    %v1551 = vunpack.c.h.b16 %v1185
    %v1552 = vunpack.c.l.b16 %v1186
    %v1553 = vunpack.c.h.b16 %v1186
    %v1554 = vunpack.c.l.b16 %v1187
    %v1555 = vunpack.c.h.b16 %v1187
    %v1556 = vunpack.c.l.b16 %v1188
    %v1557 = vunpack.c.h.b16 %v1188
    %v1558 = vunpack.c.l.b16 %v1189
    %v1559 = vunpack.c.h.b16 %v1189
    %v1560 = vunpack.c.l.b16 %v1190
    %v1561 = vunpack.c.h.b16 %v1190
    %v1562 = vunpack.c.l.b16 %v1191
    %v1563 = vunpack.c.h.b16 %v1191
    %v1564 = vunpack.c.l.b16 %v1192
    %v1565 = vunpack.c.h.b16 %v1192
    %v1566 = vunpack.c.l.b16 %v1193
    %v1567 = vunpack.c.h.b16 %v1193
    %v1568 = vunpack.c.l.b16 %v1194
    %v1569 = vunpack.c.h.b16 %v1194
    %v1570 = vunpack.c.l.b16 %v1195
    %v1571 = vunpack.c.h.b16 %v1195
    %v1572 = vunpack.c.l.b16 %v1196
    %v1573 = vunpack.c.h.b16 %v1196
    %v1574 = vunpack.c.l.b16 %v1197
    %v1575 = vunpack.c.h.b16 %v1197
    %v1576 = vunpack.c.l.b16 %v1198
    %v1577 = vunpack.c.h.b16 %v1198
    %v1578 = vunpack.c.l.b16 %v1199
    %v1579 = vunpack.c.h.b16 %v1199
    %v1580 = vunpack.c.l.b16 %v1200
    %v1581 = vunpack.c.h.b16 %v1200
    %v1582 = vunpack.c.l.b16 %v1201
    %v1583 = vunpack.c.h.b16 %v1201
    %v1584 = vunpack.c.l.b16 %v1202
    %v1585 = vunpack.c.h.b16 %v1202
    %v1586 = vunpack.c.l.b16 %v1203
    %v1587 = vunpack.c.h.b16 %v1203
    %v1588 = vunpack.c.l.b16 %v1204
    %v1589 = vunpack.c.h.b16 %v1204
    %v1590 = vunpack.c.l.b16 %v1205
    %v1591 = vunpack.c.h.b16 %v1205
    %v1592 = vunpack.c.l.b16 %v1206
    %v1593 = vunpack.c.h.b16 %v1206
    %v1594 = vunpack.c.l.b16 %v1207
    %v1595 = vunpack.c.h.b16 %v1207
    %v1596 = vunpack.c.l.b16 %v1208
    %v1597 = vunpack.c.h.b16 %v1208
    %v1598 = vunpack.c.l.b16 %v1209
    %v1599 = vunpack.c.h.b16 %v1209
    %v1600 = vunpack.c.l.b16 %v1210
    %v1601 = vunpack.c.h.b16 %v1210
    %v1602 = vunpack.c.l.b16 %v1211
    %v1603 = vunpack.c.h.b16 %v1211
    %v1604 = vunpack.c.l.b16 %v1212
    %v1605 = vunpack.c.h.b16 %v1212
    %v1606 = vunpack.c.l.b16 %v1213
    %v1607 = vunpack.c.h.b16 %v1213
    %v1608 = vpack.c.b16 %v1356, %v1352
    %v1609 = vpack.c.b16 %v1357, %v1353
    %v1610 = vpack.c.b16 %v1358, %v1354
    %v1611 = vpack.c.b16 %v1359, %v1355
    %v1612 = vpack.c.b16 %v1364, %v1360
    %v1613 = vpack.c.b16 %v1365, %v1361
    %v1614 = vpack.c.b16 %v1366, %v1362
    %v1615 = vpack.c.b16 %v1367, %v1363
    %v1616 = vpack.c.b16 %v1372, %v1368
    %v1617 = vpack.c.b16 %v1373, %v1369
    %v1618 = vpack.c.b16 %v1374, %v1370
    %v1619 = vpack.c.b16 %v1375, %v1371
    %v1620 = vpack.c.b16 %v1380, %v1376
    %v1621 = vpack.c.b16 %v1381, %v1377
    %v1622 = vpack.c.b16 %v1382, %v1378
    %v1623 = vpack.c.b16 %v1383, %v1379
    %v1624 = vpack.c.b16 %v1388, %v1384
    %v1625 = vpack.c.b16 %v1389, %v1385
    %v1626 = vpack.c.b16 %v1390, %v1386
    %v1627 = vpack.c.b16 %v1391, %v1387
    %v1628 = vpack.c.b16 %v1396, %v1392
    %v1629 = vpack.c.b16 %v1397, %v1393
    %v1630 = vpack.c.b16 %v1398, %v1394
    %v1631 = vpack.c.b16 %v1399, %v1395
    %v1632 = vpack.c.b16 %v1404, %v1400
    %v1633 = vpack.c.b16 %v1405, %v1401
    %v1634 = vpack.c.b16 %v1406, %v1402
    %v1635 = vpack.c.b16 %v1407, %v1403
    %v1636 = vpack.c.b16 %v1412, %v1408
    %v1637 = vpack.c.b16 %v1413, %v1409
    %v1638 = vpack.c.b16 %v1414, %v1410
    %v1639 = vpack.c.b16 %v1415, %v1411
    %v1640 = vpack.c.b16 %v1420, %v1416
    %v1641 = vpack.c.b16 %v1421, %v1417
    %v1642 = vpack.c.b16 %v1422, %v1418
    %v1643 = vpack.c.b16 %v1423, %v1419
    %v1644 = vpack.c.b16 %v1428, %v1424
    %v1645 = vpack.c.b16 %v1429, %v1425
    %v1646 = vpack.c.b16 %v1430, %v1426
    %v1647 = vpack.c.b16 %v1431, %v1427
    %v1648 = vpack.c.b16 %v1436, %v1432
    %v1649 = vpack.c.b16 %v1437, %v1433
    %v1650 = vpack.c.b16 %v1438, %v1434
    %v1651 = vpack.c.b16 %v1439, %v1435
    %v1652 = vpack.c.b16 %v1444, %v1440
    %v1653 = vpack.c.b16 %v1445, %v1441
    %v1654 = vpack.c.b16 %v1446, %v1442
    %v1655 = vpack.c.b16 %v1447, %v1443
    %v1656 = vpack.c.b16 %v1452, %v1448
    %v1657 = vpack.c.b16 %v1453, %v1449
    %v1658 = vpack.c.b16 %v1454, %v1450
    %v1659 = vpack.c.b16 %v1455, %v1451
    %v1660 = vpack.c.b16 %v1460, %v1456
    %v1661 = vpack.c.b16 %v1461, %v1457
    %v1662 = vpack.c.b16 %v1462, %v1458
    %v1663 = vpack.c.b16 %v1463, %v1459
    %v1664 = vpack.c.b16 %v1468, %v1464
    %v1665 = vpack.c.b16 %v1469, %v1465
    %v1666 = vpack.c.b16 %v1470, %v1466
    %v1667 = vpack.c.b16 %v1471, %v1467
    %v1668 = vpack.c.b16 %v1476, %v1472
    %v1669 = vpack.c.b16 %v1477, %v1473
    %v1670 = vpack.c.b16 %v1478, %v1474
    %v1671 = vpack.c.b16 %v1479, %v1475
    %v1672 = vpack.c.b16 %v1484, %v1480
    %v1673 = vpack.c.b16 %v1485, %v1481
    %v1674 = vpack.c.b16 %v1486, %v1482
    %v1675 = vpack.c.b16 %v1487, %v1483
    %v1676 = vpack.c.b16 %v1492, %v1488
    %v1677 = vpack.c.b16 %v1493, %v1489
    %v1678 = vpack.c.b16 %v1494, %v1490
    %v1679 = vpack.c.b16 %v1495, %v1491
    %v1680 = vpack.c.b16 %v1500, %v1496
    %v1681 = vpack.c.b16 %v1501, %v1497
    %v1682 = vpack.c.b16 %v1502, %v1498
    %v1683 = vpack.c.b16 %v1503, %v1499
    %v1684 = vpack.c.b16 %v1508, %v1504
    %v1685 = vpack.c.b16 %v1509, %v1505
    %v1686 = vpack.c.b16 %v1510, %v1506
    %v1687 = vpack.c.b16 %v1511, %v1507
    %v1688 = vpack.c.b16 %v1516, %v1512
    %v1689 = vpack.c.b16 %v1517, %v1513
    %v1690 = vpack.c.b16 %v1518, %v1514
    %v1691 = vpack.c.b16 %v1519, %v1515
    %v1692 = vpack.c.b16 %v1524, %v1520
    %v1693 = vpack.c.b16 %v1525, %v1521
    %v1694 = vpack.c.b16 %v1526, %v1522
    %v1695 = vpack.c.b16 %v1527, %v1523
    %v1696 = vpack.c.b16 %v1532, %v1528
    %v1697 = vpack.c.b16 %v1533, %v1529
    %v1698 = vpack.c.b16 %v1534, %v1530
    %v1699 = vpack.c.b16 %v1535, %v1531
    %v1700 = vpack.c.b16 %v1540, %v1536
    %v1701 = vpack.c.b16 %v1541, %v1537
    %v1702 = vpack.c.b16 %v1542, %v1538
    %v1703 = vpack.c.b16 %v1543, %v1539
    %v1704 = vpack.c.b16 %v1548, %v1544
    %v1705 = vpack.c.b16 %v1549, %v1545
    %v1706 = vpack.c.b16 %v1550, %v1546
    %v1707 = vpack.c.b16 %v1551, %v1547
    %v1708 = vpack.c.b16 %v1556, %v1552
    %v1709 = vpack.c.b16 %v1557, %v1553
    %v1710 = vpack.c.b16 %v1558, %v1554
    %v1711 = vpack.c.b16 %v1559, %v1555
    %v1712 = vpack.c.b16 %v1564, %v1560
    %v1713 = vpack.c.b16 %v1565, %v1561
    %v1714 = vpack.c.b16 %v1566, %v1562
    %v1715 = vpack.c.b16 %v1567, %v1563
    %v1716 = vpack.c.b16 %v1572, %v1568
    %v1717 = vpack.c.b16 %v1573, %v1569
    %v1718 = vpack.c.b16 %v1574, %v1570
    %v1719 = vpack.c.b16 %v1575, %v1571
    %v1720 = vpack.c.b16 %v1580, %v1576
    %v1721 = vpack.c.b16 %v1581, %v1577
    %v1722 = vpack.c.b16 %v1582, %v1578
    %v1723 = vpack.c.b16 %v1583, %v1579
    %v1724 = vpack.c.b16 %v1588, %v1584
    %v1725 = vpack.c.b16 %v1589, %v1585
    %v1726 = vpack.c.b16 %v1590, %v1586
    %v1727 = vpack.c.b16 %v1591, %v1587
    %v1728 = vpack.c.b16 %v1596, %v1592
    %v1729 = vpack.c.b16 %v1597, %v1593
    %v1730 = vpack.c.b16 %v1598, %v1594
    %v1731 = vpack.c.b16 %v1599, %v1595
    %v1732 = vpack.c.b16 %v1604, %v1600
    %v1733 = vpack.c.b16 %v1605, %v1601
    %v1734 = vpack.c.b16 %v1606, %v1602
    %v1735 = vpack.c.b16 %v1607, %v1603
    %1864 = vmatpush.bf16.msra.mxu0 %v1636
    %1865 = vmatpush.bf16.msra.mxu0 %v1632
    %1866 = vmatpush.bf16.msra.mxu0 %v1628
    %1867 = vmatpush.bf16.msra.mxu0 %v1624
    %1868 = vmatpush.bf16.msra.mxu0 %v1620
    %1869 = vmatpush.bf16.msra.mxu0 %v1616
    %1870 = vmatpush.bf16.msra.mxu0 %v1612
    %1871 = vmatpush.bf16.msra.mxu0 %v1608
    %1872 = vmatmul.bf16.gmra.mxu0 %v72
    %v1873 = vpop.f32.mrf.mxu0
    %v1874 = vadd.f32 %v1216, %v1873
    %v1875 = vpop.f32.mrf.mxu0
    %v1876 = vadd.f32 %v1216, %v1875
    %1877 = vdwg.mxu0
    %1878 = vmatpush.bf16.msra.mxu0 %v1668
    %1879 = vmatpush.bf16.msra.mxu0 %v1664
    %1880 = vmatpush.bf16.msra.mxu0 %v1660
    %1881 = vmatpush.bf16.msra.mxu0 %v1656
    %1882 = vmatpush.bf16.msra.mxu0 %v1652
    %1883 = vmatpush.bf16.msra.mxu0 %v1648
    %1884 = vmatpush.bf16.msra.mxu0 %v1644
    %1885 = vmatpush.bf16.msra.mxu0 %v1640
    %1886 = vmatmul.bf16.gmra.mxu0 %v73
    %v1887 = vpop.f32.mrf.mxu0
    %v1888 = vadd.f32 %v1874, %v1887
    %v1889 = vpop.f32.mrf.mxu0
    %v1890 = vadd.f32 %v1876, %v1889
    %1891 = vdwg.mxu0
    %1892 = vmatpush.bf16.msra.mxu0 %v1700
    %1893 = vmatpush.bf16.msra.mxu0 %v1696
    %1894 = vmatpush.bf16.msra.mxu0 %v1692
    %1895 = vmatpush.bf16.msra.mxu0 %v1688
    %1896 = vmatpush.bf16.msra.mxu0 %v1684
    %1897 = vmatpush.bf16.msra.mxu0 %v1680
    %1898 = vmatpush.bf16.msra.mxu0 %v1676
    %1899 = vmatpush.bf16.msra.mxu0 %v1672
    %1900 = vmatmul.bf16.gmra.mxu0 %v74
    %v1901 = vpop.f32.mrf.mxu0
    %v1902 = vadd.f32 %v1888, %v1901
    %v1903 = vpop.f32.mrf.mxu0
    %v1904 = vadd.f32 %v1890, %v1903
    %1905 = vdwg.mxu0
    %1906 = vmatpush.bf16.msra.mxu0 %v1732
    %1907 = vmatpush.bf16.msra.mxu0 %v1728
    %1908 = vmatpush.bf16.msra.mxu0 %v1724
    %1909 = vmatpush.bf16.msra.mxu0 %v1720
    %1910 = vmatpush.bf16.msra.mxu0 %v1716
    %1911 = vmatpush.bf16.msra.mxu0 %v1712
    %1912 = vmatpush.bf16.msra.mxu0 %v1708
    %1913 = vmatpush.bf16.msra.mxu0 %v1704
    %1914 = vmatmul.bf16.gmra.mxu0 %v75
    %v1915 = vpop.f32.mrf.mxu0
    %v1916 = vadd.f32 %v1902, %v1915
    %v1917 = vpop.f32.mrf.mxu0
    %v1918 = vadd.f32 %v1904, %v1917
    %1919 = vdwg.mxu0
    %1920 = vmatpush.bf16.msra.mxu0 %v1637
    %1921 = vmatpush.bf16.msra.mxu0 %v1633
    %1922 = vmatpush.bf16.msra.mxu0 %v1629
    %1923 = vmatpush.bf16.msra.mxu0 %v1625
    %1924 = vmatpush.bf16.msra.mxu0 %v1621
    %1925 = vmatpush.bf16.msra.mxu0 %v1617
    %1926 = vmatpush.bf16.msra.mxu0 %v1613
    %1927 = vmatpush.bf16.msra.mxu0 %v1609
    %1928 = vmatmul.bf16.gmra.mxu0 %v72
    %v1929 = vpop.f32.mrf.mxu0
    %v1930 = vadd.f32 %v1217, %v1929
    %v1931 = vpop.f32.mrf.mxu0
    %v1932 = vadd.f32 %v1217, %v1931
    %1933 = vdwg.mxu0
    %1934 = vmatpush.bf16.msra.mxu0 %v1669
    %1935 = vmatpush.bf16.msra.mxu0 %v1665
    %1936 = vmatpush.bf16.msra.mxu0 %v1661
    %1937 = vmatpush.bf16.msra.mxu0 %v1657
    %1938 = vmatpush.bf16.msra.mxu0 %v1653
    %1939 = vmatpush.bf16.msra.mxu0 %v1649
    %1940 = vmatpush.bf16.msra.mxu0 %v1645
    %1941 = vmatpush.bf16.msra.mxu0 %v1641
    %1942 = vmatmul.bf16.gmra.mxu0 %v73
    %v1943 = vpop.f32.mrf.mxu0
    %v1944 = vadd.f32 %v1930, %v1943
    %v1945 = vpop.f32.mrf.mxu0
    %v1946 = vadd.f32 %v1932, %v1945
    %1947 = vdwg.mxu0
    %1948 = vmatpush.bf16.msra.mxu0 %v1701
    %1949 = vmatpush.bf16.msra.mxu0 %v1697
    %1950 = vmatpush.bf16.msra.mxu0 %v1693
    %1951 = vmatpush.bf16.msra.mxu0 %v1689
    %1952 = vmatpush.bf16.msra.mxu0 %v1685
    %1953 = vmatpush.bf16.msra.mxu0 %v1681
    %1954 = vmatpush.bf16.msra.mxu0 %v1677
    %1955 = vmatpush.bf16.msra.mxu0 %v1673
    %1956 = vmatmul.bf16.gmra.mxu0 %v74
    %v1957 = vpop.f32.mrf.mxu0
    %v1958 = vadd.f32 %v1944, %v1957
    %v1959 = vpop.f32.mrf.mxu0
    %v1960 = vadd.f32 %v1946, %v1959
    %1961 = vdwg.mxu0
    %1962 = vmatpush.bf16.msra.mxu0 %v1733
    %1963 = vmatpush.bf16.msra.mxu0 %v1729
    %1964 = vmatpush.bf16.msra.mxu0 %v1725
    %1965 = vmatpush.bf16.msra.mxu0 %v1721
    %1966 = vmatpush.bf16.msra.mxu0 %v1717
    %1967 = vmatpush.bf16.msra.mxu0 %v1713
    %1968 = vmatpush.bf16.msra.mxu0 %v1709
    %1969 = vmatpush.bf16.msra.mxu0 %v1705
    %1970 = vmatmul.bf16.gmra.mxu0 %v75
    %v1971 = vpop.f32.mrf.mxu0
    %v1972 = vadd.f32 %v1958, %v1971
    %v1973 = vpop.f32.mrf.mxu0
    %v1974 = vadd.f32 %v1960, %v1973
    %1975 = vdwg.mxu0
    %1976 = vmatpush.bf16.msra.mxu0 %v1638
    %1977 = vmatpush.bf16.msra.mxu0 %v1634
    %1978 = vmatpush.bf16.msra.mxu0 %v1630
    %1979 = vmatpush.bf16.msra.mxu0 %v1626
    %1980 = vmatpush.bf16.msra.mxu0 %v1622
    %1981 = vmatpush.bf16.msra.mxu0 %v1618
    %1982 = vmatpush.bf16.msra.mxu0 %v1614
    %1983 = vmatpush.bf16.msra.mxu0 %v1610
    %1984 = vmatmul.bf16.gmra.mxu0 %v72
    %v1985 = vpop.f32.mrf.mxu0
    %v1986 = vadd.f32 %v1218, %v1985
    %v1987 = vpop.f32.mrf.mxu0
    %v1988 = vadd.f32 %v1218, %v1987
    %1989 = vdwg.mxu0
    %1990 = vmatpush.bf16.msra.mxu0 %v1670
    %1991 = vmatpush.bf16.msra.mxu0 %v1666
    %1992 = vmatpush.bf16.msra.mxu0 %v1662
    %1993 = vmatpush.bf16.msra.mxu0 %v1658
    %1994 = vmatpush.bf16.msra.mxu0 %v1654
    %1995 = vmatpush.bf16.msra.mxu0 %v1650
    %1996 = vmatpush.bf16.msra.mxu0 %v1646
    %1997 = vmatpush.bf16.msra.mxu0 %v1642
    %1998 = vmatmul.bf16.gmra.mxu0 %v73
    %v1999 = vpop.f32.mrf.mxu0
    %v2000 = vadd.f32 %v1986, %v1999
    %v2001 = vpop.f32.mrf.mxu0
    %v2002 = vadd.f32 %v1988, %v2001
    %2003 = vdwg.mxu0
    %2004 = vmatpush.bf16.msra.mxu0 %v1702
    %2005 = vmatpush.bf16.msra.mxu0 %v1698
    %2006 = vmatpush.bf16.msra.mxu0 %v1694
    %2007 = vmatpush.bf16.msra.mxu0 %v1690
    %2008 = vmatpush.bf16.msra.mxu0 %v1686
    %2009 = vmatpush.bf16.msra.mxu0 %v1682
    %2010 = vmatpush.bf16.msra.mxu0 %v1678
    %2011 = vmatpush.bf16.msra.mxu0 %v1674
    %2012 = vmatmul.bf16.gmra.mxu0 %v74
    %v2013 = vpop.f32.mrf.mxu0
    %v2014 = vadd.f32 %v2000, %v2013
    %v2015 = vpop.f32.mrf.mxu0
    %v2016 = vadd.f32 %v2002, %v2015
    %2017 = vdwg.mxu0
    %2018 = vmatpush.bf16.msra.mxu0 %v1734
    %2019 = vmatpush.bf16.msra.mxu0 %v1730
    %2020 = vmatpush.bf16.msra.mxu0 %v1726
    %2021 = vmatpush.bf16.msra.mxu0 %v1722
    %2022 = vmatpush.bf16.msra.mxu0 %v1718
    %2023 = vmatpush.bf16.msra.mxu0 %v1714
    %2024 = vmatpush.bf16.msra.mxu0 %v1710
    %2025 = vmatpush.bf16.msra.mxu0 %v1706
    %2026 = vmatmul.bf16.gmra.mxu0 %v75
    %v2027 = vpop.f32.mrf.mxu0
    %v2028 = vadd.f32 %v2014, %v2027
    %v2029 = vpop.f32.mrf.mxu0
    %v2030 = vadd.f32 %v2016, %v2029
    %2031 = vdwg.mxu0
    %2032 = vmatpush.bf16.msra.mxu0 %v1639
    %2033 = vmatpush.bf16.msra.mxu0 %v1635
    %2034 = vmatpush.bf16.msra.mxu0 %v1631
    %2035 = vmatpush.bf16.msra.mxu0 %v1627
    %2036 = vmatpush.bf16.msra.mxu0 %v1623
    %2037 = vmatpush.bf16.msra.mxu0 %v1619
    %2038 = vmatpush.bf16.msra.mxu0 %v1615
    %2039 = vmatpush.bf16.msra.mxu0 %v1611
    %2040 = vmatmul.bf16.gmra.mxu0 %v72
    %v2041 = vpop.f32.mrf.mxu0
    %v2042 = vadd.f32 %v1219, %v2041
    %v2043 = vpop.f32.mrf.mxu0
    %v2044 = vadd.f32 %v1219, %v2043
    %2045 = vdwg.mxu0
    %2046 = vmatpush.bf16.msra.mxu0 %v1671
    %2047 = vmatpush.bf16.msra.mxu0 %v1667
    %2048 = vmatpush.bf16.msra.mxu0 %v1663
    %2049 = vmatpush.bf16.msra.mxu0 %v1659
    %2050 = vmatpush.bf16.msra.mxu0 %v1655
    %2051 = vmatpush.bf16.msra.mxu0 %v1651
    %2052 = vmatpush.bf16.msra.mxu0 %v1647
    %2053 = vmatpush.bf16.msra.mxu0 %v1643
    %2054 = vmatmul.bf16.gmra.mxu0 %v73
    %v2055 = vpop.f32.mrf.mxu0
    %v2056 = vadd.f32 %v2042, %v2055
    %v2057 = vpop.f32.mrf.mxu0
    %v2058 = vadd.f32 %v2044, %v2057
    %2059 = vdwg.mxu0
    %2060 = vmatpush.bf16.msra.mxu0 %v1703
    %2061 = vmatpush.bf16.msra.mxu0 %v1699
    %2062 = vmatpush.bf16.msra.mxu0 %v1695
    %2063 = vmatpush.bf16.msra.mxu0 %v1691
    %2064 = vmatpush.bf16.msra.mxu0 %v1687
    %2065 = vmatpush.bf16.msra.mxu0 %v1683
    %2066 = vmatpush.bf16.msra.mxu0 %v1679
    %2067 = vmatpush.bf16.msra.mxu0 %v1675
    %2068 = vmatmul.bf16.gmra.mxu0 %v74
    %v2069 = vpop.f32.mrf.mxu0
    %v2070 = vadd.f32 %v2056, %v2069
    %v2071 = vpop.f32.mrf.mxu0
    %v2072 = vadd.f32 %v2058, %v2071
    %2073 = vdwg.mxu0
    %2074 = vmatpush.bf16.msra.mxu0 %v1735
    %2075 = vmatpush.bf16.msra.mxu0 %v1731
    %2076 = vmatpush.bf16.msra.mxu0 %v1727
    %2077 = vmatpush.bf16.msra.mxu0 %v1723
    %2078 = vmatpush.bf16.msra.mxu0 %v1719
    %2079 = vmatpush.bf16.msra.mxu0 %v1715
    %2080 = vmatpush.bf16.msra.mxu0 %v1711
    %2081 = vmatpush.bf16.msra.mxu0 %v1707
    %2082 = vmatmul.bf16.gmra.mxu0 %v75
    %v2083 = vpop.f32.mrf.mxu0
    %v2084 = vadd.f32 %v2070, %v2083
    %v2085 = vpop.f32.mrf.mxu0
    %v2086 = vadd.f32 %v2072, %v2085
    %2087 = vdwg.mxu0
    %2088 = vst [vmem:[#allocation9] sm:$0xff] %v1916
    %2089 = vst [vmem:[#allocation9 + $0x8] sm:$0xff] %v1972
    %2090 = vst [vmem:[#allocation9 + $0x10] sm:$0xff] %v2028
    %2091 = vst [vmem:[#allocation9 + $0x18] sm:$0xff] %v2084
    %2092 = vst [vmem:[#allocation9 + $0x20] sm:$0xff] %v1918
    %2093 = vst [vmem:[#allocation9 + $0x28] sm:$0xff] %v1974
    %2094 = vst [vmem:[#allocation9 + $0x30] sm:$0xff] %v2030
    %2095 = vst [vmem:[#allocation9 + $0x38] sm:$0xff] %v2086
    %v2096 = vld [vmem:[#allocation5 + $0x20] sm:$0xff]
    %v2097 = vld [vmem:[#allocation5 + $0x28] sm:$0xff]
    %v2098 = vld [vmem:[#allocation5 + $0x50] sm:$0xff]
    %v2099 = vld [vmem:[#allocation5 + $0x58] sm:$0xff]
    %v2100 = vld [vmem:[#allocation5 + $0x80] sm:$0xff]
    %v2101 = vld [vmem:[#allocation5 + $0x88] sm:$0xff]
    %v2102 = vld [vmem:[#allocation5 + $0xb0] sm:$0xff]
    %v2103 = vld [vmem:[#allocation5 + $0xb8] sm:$0xff]
    %v2104 = vld [vmem:[#allocation5 + $0xe0] sm:$0xff]
    %v2105 = vld [vmem:[#allocation5 + $0xe8] sm:$0xff]
    %v2106 = vld [vmem:[#allocation5 + $0x110] sm:$0xff]
    %v2107 = vld [vmem:[#allocation5 + $0x118] sm:$0xff]
    %v2108 = vld [vmem:[#allocation5 + $0x140] sm:$0xff]
    %v2109 = vld [vmem:[#allocation5 + $0x148] sm:$0xff]
    %v2110 = vld [vmem:[#allocation5 + $0x170] sm:$0xff]
    %v2111 = vld [vmem:[#allocation5 + $0x178] sm:$0xff]
    %v2112 = vld [vmem:[#allocation5 + $0x1a0] sm:$0xff]
    %v2113 = vld [vmem:[#allocation5 + $0x1a8] sm:$0xff]
    %v2114 = vld [vmem:[#allocation5 + $0x1d0] sm:$0xff]
    %v2115 = vld [vmem:[#allocation5 + $0x1d8] sm:$0xff]
    %v2116 = vld [vmem:[#allocation5 + $0x200] sm:$0xff]
    %v2117 = vld [vmem:[#allocation5 + $0x208] sm:$0xff]
    %v2118 = vld [vmem:[#allocation5 + $0x230] sm:$0xff]
    %v2119 = vld [vmem:[#allocation5 + $0x238] sm:$0xff]
    %v2120 = vld [vmem:[#allocation5 + $0x260] sm:$0xff]
    %v2121 = vld [vmem:[#allocation5 + $0x268] sm:$0xff]
    %v2122 = vld [vmem:[#allocation5 + $0x290] sm:$0xff]
    %v2123 = vld [vmem:[#allocation5 + $0x298] sm:$0xff]
    %v2124 = vld [vmem:[#allocation5 + $0x2c0] sm:$0xff]
    %v2125 = vld [vmem:[#allocation5 + $0x2c8] sm:$0xff]
    %v2126 = vld [vmem:[#allocation5 + $0x2f0] sm:$0xff]
    %v2127 = vld [vmem:[#allocation5 + $0x2f8] sm:$0xff]
    %v2128 = vld [vmem:[#allocation5 + $0x320] sm:$0xff]
    %v2129 = vld [vmem:[#allocation5 + $0x328] sm:$0xff]
    %v2130 = vld [vmem:[#allocation5 + $0x350] sm:$0xff]
    %v2131 = vld [vmem:[#allocation5 + $0x358] sm:$0xff]
    %v2132 = vld [vmem:[#allocation5 + $0x380] sm:$0xff]
    %v2133 = vld [vmem:[#allocation5 + $0x388] sm:$0xff]
    %v2134 = vld [vmem:[#allocation5 + $0x3b0] sm:$0xff]
    %v2135 = vld [vmem:[#allocation5 + $0x3b8] sm:$0xff]
    %v2136 = vld [vmem:[#allocation5 + $0x3e0] sm:$0xff]
    %v2137 = vld [vmem:[#allocation5 + $0x3e8] sm:$0xff]
    %v2138 = vld [vmem:[#allocation5 + $0x410] sm:$0xff]
    %v2139 = vld [vmem:[#allocation5 + $0x418] sm:$0xff]
    %v2140 = vld [vmem:[#allocation5 + $0x440] sm:$0xff]
    %v2141 = vld [vmem:[#allocation5 + $0x448] sm:$0xff]
    %v2142 = vld [vmem:[#allocation5 + $0x470] sm:$0xff]
    %v2143 = vld [vmem:[#allocation5 + $0x478] sm:$0xff]
    %v2144 = vld [vmem:[#allocation5 + $0x4a0] sm:$0xff]
    %v2145 = vld [vmem:[#allocation5 + $0x4a8] sm:$0xff]
    %v2146 = vld [vmem:[#allocation5 + $0x4d0] sm:$0xff]
    %v2147 = vld [vmem:[#allocation5 + $0x4d8] sm:$0xff]
    %v2148 = vld [vmem:[#allocation5 + $0x500] sm:$0xff]
    %v2149 = vld [vmem:[#allocation5 + $0x508] sm:$0xff]
    %v2150 = vld [vmem:[#allocation5 + $0x530] sm:$0xff]
    %v2151 = vld [vmem:[#allocation5 + $0x538] sm:$0xff]
    %v2152 = vld [vmem:[#allocation5 + $0x560] sm:$0xff]
    %v2153 = vld [vmem:[#allocation5 + $0x568] sm:$0xff]
    %v2154 = vld [vmem:[#allocation5 + $0x590] sm:$0xff]
    %v2155 = vld [vmem:[#allocation5 + $0x598] sm:$0xff]
    %v2156 = vld [vmem:[#allocation5 + $0x5c0] sm:$0xff]
    %v2157 = vld [vmem:[#allocation5 + $0x5c8] sm:$0xff]
    %v2158 = vld [vmem:[#allocation5 + $0x5f0] sm:$0xff]
    %v2159 = vld [vmem:[#allocation5 + $0x5f8] sm:$0xff]
    %v2160 = vld [vmem:[#allocation5 + $0x620] sm:$0xff]
    %v2161 = vld [vmem:[#allocation5 + $0x628] sm:$0xff]
    %v2162 = vld [vmem:[#allocation5 + $0x650] sm:$0xff]
    %v2163 = vld [vmem:[#allocation5 + $0x658] sm:$0xff]
    %v2164 = vld [vmem:[#allocation5 + $0x680] sm:$0xff]
    %v2165 = vld [vmem:[#allocation5 + $0x688] sm:$0xff]
    %v2166 = vld [vmem:[#allocation5 + $0x6b0] sm:$0xff]
    %v2167 = vld [vmem:[#allocation5 + $0x6b8] sm:$0xff]
    %v2168 = vld [vmem:[#allocation5 + $0x6e0] sm:$0xff]
    %v2169 = vld [vmem:[#allocation5 + $0x6e8] sm:$0xff]
    %v2170 = vld [vmem:[#allocation5 + $0x710] sm:$0xff]
    %v2171 = vld [vmem:[#allocation5 + $0x718] sm:$0xff]
    %v2172 = vld [vmem:[#allocation5 + $0x740] sm:$0xff]
    %v2173 = vld [vmem:[#allocation5 + $0x748] sm:$0xff]
    %v2174 = vld [vmem:[#allocation5 + $0x770] sm:$0xff]
    %v2175 = vld [vmem:[#allocation5 + $0x778] sm:$0xff]
    %v2176 = vld [vmem:[#allocation5 + $0x7a0] sm:$0xff]
    %v2177 = vld [vmem:[#allocation5 + $0x7a8] sm:$0xff]
    %v2178 = vld [vmem:[#allocation5 + $0x7d0] sm:$0xff]
    %v2179 = vld [vmem:[#allocation5 + $0x7d8] sm:$0xff]
    %v2180 = vld [vmem:[#allocation5 + $0x800] sm:$0xff]
    %v2181 = vld [vmem:[#allocation5 + $0x808] sm:$0xff]
    %v2182 = vld [vmem:[#allocation5 + $0x830] sm:$0xff]
    %v2183 = vld [vmem:[#allocation5 + $0x838] sm:$0xff]
    %v2184 = vld [vmem:[#allocation5 + $0x860] sm:$0xff]
    %v2185 = vld [vmem:[#allocation5 + $0x868] sm:$0xff]
    %v2186 = vld [vmem:[#allocation5 + $0x890] sm:$0xff]
    %v2187 = vld [vmem:[#allocation5 + $0x898] sm:$0xff]
    %v2188 = vld [vmem:[#allocation5 + $0x8c0] sm:$0xff]
    %v2189 = vld [vmem:[#allocation5 + $0x8c8] sm:$0xff]
    %v2190 = vld [vmem:[#allocation5 + $0x8f0] sm:$0xff]
    %v2191 = vld [vmem:[#allocation5 + $0x8f8] sm:$0xff]
    %v2192 = vld [vmem:[#allocation5 + $0x920] sm:$0xff]
    %v2193 = vld [vmem:[#allocation5 + $0x928] sm:$0xff]
    %v2194 = vld [vmem:[#allocation5 + $0x950] sm:$0xff]
    %v2195 = vld [vmem:[#allocation5 + $0x958] sm:$0xff]
    %v2196 = vld [vmem:[#allocation5 + $0x980] sm:$0xff]
    %v2197 = vld [vmem:[#allocation5 + $0x988] sm:$0xff]
    %v2198 = vld [vmem:[#allocation5 + $0x9b0] sm:$0xff]
    %v2199 = vld [vmem:[#allocation5 + $0x9b8] sm:$0xff]
    %v2200 = vld [vmem:[#allocation5 + $0x9e0] sm:$0xff]
    %v2201 = vld [vmem:[#allocation5 + $0x9e8] sm:$0xff]
    %v2202 = vld [vmem:[#allocation5 + $0xa10] sm:$0xff]
    %v2203 = vld [vmem:[#allocation5 + $0xa18] sm:$0xff]
    %v2204 = vld [vmem:[#allocation5 + $0xa40] sm:$0xff]
    %v2205 = vld [vmem:[#allocation5 + $0xa48] sm:$0xff]
    %v2206 = vld [vmem:[#allocation5 + $0xa70] sm:$0xff]
    %v2207 = vld [vmem:[#allocation5 + $0xa78] sm:$0xff]
    %v2208 = vld [vmem:[#allocation5 + $0xaa0] sm:$0xff]
    %v2209 = vld [vmem:[#allocation5 + $0xaa8] sm:$0xff]
    %v2210 = vld [vmem:[#allocation5 + $0xad0] sm:$0xff]
    %v2211 = vld [vmem:[#allocation5 + $0xad8] sm:$0xff]
    %v2212 = vld [vmem:[#allocation5 + $0xb00] sm:$0xff]
    %v2213 = vld [vmem:[#allocation5 + $0xb08] sm:$0xff]
    %v2214 = vld [vmem:[#allocation5 + $0xb30] sm:$0xff]
    %v2215 = vld [vmem:[#allocation5 + $0xb38] sm:$0xff]
    %v2216 = vld [vmem:[#allocation5 + $0xb60] sm:$0xff]
    %v2217 = vld [vmem:[#allocation5 + $0xb68] sm:$0xff]
    %v2218 = vld [vmem:[#allocation5 + $0xb90] sm:$0xff]
    %v2219 = vld [vmem:[#allocation5 + $0xb98] sm:$0xff]
    %v2220 = vld [vmem:[#allocation5 + $0xbc0] sm:$0xff]
    %v2221 = vld [vmem:[#allocation5 + $0xbc8] sm:$0xff]
    %v2222 = vld [vmem:[#allocation5 + $0xbf0] sm:$0xff]
    %v2223 = vld [vmem:[#allocation5 + $0xbf8] sm:$0xff]
    %v2224 = vld [vmem:[#allocation7 + $0x8] sm:$0xf]
    %v2226 = vperm.slane %v2224, 0
    %v2227 = vperm.slane %v2224, 1
    %v2228 = vperm.slane %v2224, 2
    %v2229 = vperm.slane %v2224, 3
    %v2362 = vunpack.c.l.b16 %v2096
    %v2363 = vunpack.c.h.b16 %v2096
    %v2364 = vunpack.c.l.b16 %v2097
    %v2365 = vunpack.c.h.b16 %v2097
    %v2366 = vunpack.c.l.b16 %v2098
    %v2367 = vunpack.c.h.b16 %v2098
    %v2368 = vunpack.c.l.b16 %v2099
    %v2369 = vunpack.c.h.b16 %v2099
    %v2370 = vunpack.c.l.b16 %v2100
    %v2371 = vunpack.c.h.b16 %v2100
    %v2372 = vunpack.c.l.b16 %v2101
    %v2373 = vunpack.c.h.b16 %v2101
    %v2374 = vunpack.c.l.b16 %v2102
    %v2375 = vunpack.c.h.b16 %v2102
    %v2376 = vunpack.c.l.b16 %v2103
    %v2377 = vunpack.c.h.b16 %v2103
    %v2378 = vunpack.c.l.b16 %v2104
    %v2379 = vunpack.c.h.b16 %v2104
    %v2380 = vunpack.c.l.b16 %v2105
    %v2381 = vunpack.c.h.b16 %v2105
    %v2382 = vunpack.c.l.b16 %v2106
    %v2383 = vunpack.c.h.b16 %v2106
    %v2384 = vunpack.c.l.b16 %v2107
    %v2385 = vunpack.c.h.b16 %v2107
    %v2386 = vunpack.c.l.b16 %v2108
    %v2387 = vunpack.c.h.b16 %v2108
    %v2388 = vunpack.c.l.b16 %v2109
    %v2389 = vunpack.c.h.b16 %v2109
    %v2390 = vunpack.c.l.b16 %v2110
    %v2391 = vunpack.c.h.b16 %v2110
    %v2392 = vunpack.c.l.b16 %v2111
    %v2393 = vunpack.c.h.b16 %v2111
    %v2394 = vunpack.c.l.b16 %v2112
    %v2395 = vunpack.c.h.b16 %v2112
    %v2396 = vunpack.c.l.b16 %v2113
    %v2397 = vunpack.c.h.b16 %v2113
    %v2398 = vunpack.c.l.b16 %v2114
    %v2399 = vunpack.c.h.b16 %v2114
    %v2400 = vunpack.c.l.b16 %v2115
    %v2401 = vunpack.c.h.b16 %v2115
    %v2402 = vunpack.c.l.b16 %v2116
    %v2403 = vunpack.c.h.b16 %v2116
    %v2404 = vunpack.c.l.b16 %v2117
    %v2405 = vunpack.c.h.b16 %v2117
    %v2406 = vunpack.c.l.b16 %v2118
    %v2407 = vunpack.c.h.b16 %v2118
    %v2408 = vunpack.c.l.b16 %v2119
    %v2409 = vunpack.c.h.b16 %v2119
    %v2410 = vunpack.c.l.b16 %v2120
    %v2411 = vunpack.c.h.b16 %v2120
    %v2412 = vunpack.c.l.b16 %v2121
    %v2413 = vunpack.c.h.b16 %v2121
    %v2414 = vunpack.c.l.b16 %v2122
    %v2415 = vunpack.c.h.b16 %v2122
    %v2416 = vunpack.c.l.b16 %v2123
    %v2417 = vunpack.c.h.b16 %v2123
    %v2418 = vunpack.c.l.b16 %v2124
    %v2419 = vunpack.c.h.b16 %v2124
    %v2420 = vunpack.c.l.b16 %v2125
    %v2421 = vunpack.c.h.b16 %v2125
    %v2422 = vunpack.c.l.b16 %v2126
    %v2423 = vunpack.c.h.b16 %v2126
    %v2424 = vunpack.c.l.b16 %v2127
    %v2425 = vunpack.c.h.b16 %v2127
    %v2426 = vunpack.c.l.b16 %v2128
    %v2427 = vunpack.c.h.b16 %v2128
    %v2428 = vunpack.c.l.b16 %v2129
    %v2429 = vunpack.c.h.b16 %v2129
    %v2430 = vunpack.c.l.b16 %v2130
    %v2431 = vunpack.c.h.b16 %v2130
    %v2432 = vunpack.c.l.b16 %v2131
    %v2433 = vunpack.c.h.b16 %v2131
    %v2434 = vunpack.c.l.b16 %v2132
    %v2435 = vunpack.c.h.b16 %v2132
    %v2436 = vunpack.c.l.b16 %v2133
    %v2437 = vunpack.c.h.b16 %v2133
    %v2438 = vunpack.c.l.b16 %v2134
    %v2439 = vunpack.c.h.b16 %v2134
    %v2440 = vunpack.c.l.b16 %v2135
    %v2441 = vunpack.c.h.b16 %v2135
    %v2442 = vunpack.c.l.b16 %v2136
    %v2443 = vunpack.c.h.b16 %v2136
    %v2444 = vunpack.c.l.b16 %v2137
    %v2445 = vunpack.c.h.b16 %v2137
    %v2446 = vunpack.c.l.b16 %v2138
    %v2447 = vunpack.c.h.b16 %v2138
    %v2448 = vunpack.c.l.b16 %v2139
    %v2449 = vunpack.c.h.b16 %v2139
    %v2450 = vunpack.c.l.b16 %v2140
    %v2451 = vunpack.c.h.b16 %v2140
    %v2452 = vunpack.c.l.b16 %v2141
    %v2453 = vunpack.c.h.b16 %v2141
    %v2454 = vunpack.c.l.b16 %v2142
    %v2455 = vunpack.c.h.b16 %v2142
    %v2456 = vunpack.c.l.b16 %v2143
    %v2457 = vunpack.c.h.b16 %v2143
    %v2458 = vunpack.c.l.b16 %v2144
    %v2459 = vunpack.c.h.b16 %v2144
    %v2460 = vunpack.c.l.b16 %v2145
    %v2461 = vunpack.c.h.b16 %v2145
    %v2462 = vunpack.c.l.b16 %v2146
    %v2463 = vunpack.c.h.b16 %v2146
    %v2464 = vunpack.c.l.b16 %v2147
    %v2465 = vunpack.c.h.b16 %v2147
    %v2466 = vunpack.c.l.b16 %v2148
    %v2467 = vunpack.c.h.b16 %v2148
    %v2468 = vunpack.c.l.b16 %v2149
    %v2469 = vunpack.c.h.b16 %v2149
    %v2470 = vunpack.c.l.b16 %v2150
    %v2471 = vunpack.c.h.b16 %v2150
    %v2472 = vunpack.c.l.b16 %v2151
    %v2473 = vunpack.c.h.b16 %v2151
    %v2474 = vunpack.c.l.b16 %v2152
    %v2475 = vunpack.c.h.b16 %v2152
    %v2476 = vunpack.c.l.b16 %v2153
    %v2477 = vunpack.c.h.b16 %v2153
    %v2478 = vunpack.c.l.b16 %v2154
    %v2479 = vunpack.c.h.b16 %v2154
    %v2480 = vunpack.c.l.b16 %v2155
    %v2481 = vunpack.c.h.b16 %v2155
    %v2482 = vunpack.c.l.b16 %v2156
    %v2483 = vunpack.c.h.b16 %v2156
    %v2484 = vunpack.c.l.b16 %v2157
    %v2485 = vunpack.c.h.b16 %v2157
    %v2486 = vunpack.c.l.b16 %v2158
    %v2487 = vunpack.c.h.b16 %v2158
    %v2488 = vunpack.c.l.b16 %v2159
    %v2489 = vunpack.c.h.b16 %v2159
    %v2490 = vunpack.c.l.b16 %v2160
    %v2491 = vunpack.c.h.b16 %v2160
    %v2492 = vunpack.c.l.b16 %v2161
    %v2493 = vunpack.c.h.b16 %v2161
    %v2494 = vunpack.c.l.b16 %v2162
    %v2495 = vunpack.c.h.b16 %v2162
    %v2496 = vunpack.c.l.b16 %v2163
    %v2497 = vunpack.c.h.b16 %v2163
    %v2498 = vunpack.c.l.b16 %v2164
    %v2499 = vunpack.c.h.b16 %v2164
    %v2500 = vunpack.c.l.b16 %v2165
    %v2501 = vunpack.c.h.b16 %v2165
    %v2502 = vunpack.c.l.b16 %v2166
    %v2503 = vunpack.c.h.b16 %v2166
    %v2504 = vunpack.c.l.b16 %v2167
    %v2505 = vunpack.c.h.b16 %v2167
    %v2506 = vunpack.c.l.b16 %v2168
    %v2507 = vunpack.c.h.b16 %v2168
    %v2508 = vunpack.c.l.b16 %v2169
    %v2509 = vunpack.c.h.b16 %v2169
    %v2510 = vunpack.c.l.b16 %v2170
    %v2511 = vunpack.c.h.b16 %v2170
    %v2512 = vunpack.c.l.b16 %v2171
    %v2513 = vunpack.c.h.b16 %v2171
    %v2514 = vunpack.c.l.b16 %v2172
    %v2515 = vunpack.c.h.b16 %v2172
    %v2516 = vunpack.c.l.b16 %v2173
    %v2517 = vunpack.c.h.b16 %v2173
    %v2518 = vunpack.c.l.b16 %v2174
    %v2519 = vunpack.c.h.b16 %v2174
    %v2520 = vunpack.c.l.b16 %v2175
    %v2521 = vunpack.c.h.b16 %v2175
    %v2522 = vunpack.c.l.b16 %v2176
    %v2523 = vunpack.c.h.b16 %v2176
    %v2524 = vunpack.c.l.b16 %v2177
    %v2525 = vunpack.c.h.b16 %v2177
    %v2526 = vunpack.c.l.b16 %v2178
    %v2527 = vunpack.c.h.b16 %v2178
    %v2528 = vunpack.c.l.b16 %v2179
    %v2529 = vunpack.c.h.b16 %v2179
    %v2530 = vunpack.c.l.b16 %v2180
    %v2531 = vunpack.c.h.b16 %v2180
    %v2532 = vunpack.c.l.b16 %v2181
    %v2533 = vunpack.c.h.b16 %v2181
    %v2534 = vunpack.c.l.b16 %v2182
    %v2535 = vunpack.c.h.b16 %v2182
    %v2536 = vunpack.c.l.b16 %v2183
    %v2537 = vunpack.c.h.b16 %v2183
    %v2538 = vunpack.c.l.b16 %v2184
    %v2539 = vunpack.c.h.b16 %v2184
    %v2540 = vunpack.c.l.b16 %v2185
    %v2541 = vunpack.c.h.b16 %v2185
    %v2542 = vunpack.c.l.b16 %v2186
    %v2543 = vunpack.c.h.b16 %v2186
    %v2544 = vunpack.c.l.b16 %v2187
    %v2545 = vunpack.c.h.b16 %v2187
    %v2546 = vunpack.c.l.b16 %v2188
    %v2547 = vunpack.c.h.b16 %v2188
    %v2548 = vunpack.c.l.b16 %v2189
    %v2549 = vunpack.c.h.b16 %v2189
    %v2550 = vunpack.c.l.b16 %v2190
    %v2551 = vunpack.c.h.b16 %v2190
    %v2552 = vunpack.c.l.b16 %v2191
    %v2553 = vunpack.c.h.b16 %v2191
    %v2554 = vunpack.c.l.b16 %v2192
    %v2555 = vunpack.c.h.b16 %v2192
    %v2556 = vunpack.c.l.b16 %v2193
    %v2557 = vunpack.c.h.b16 %v2193
    %v2558 = vunpack.c.l.b16 %v2194
    %v2559 = vunpack.c.h.b16 %v2194
    %v2560 = vunpack.c.l.b16 %v2195
    %v2561 = vunpack.c.h.b16 %v2195
    %v2562 = vunpack.c.l.b16 %v2196
    %v2563 = vunpack.c.h.b16 %v2196
    %v2564 = vunpack.c.l.b16 %v2197
    %v2565 = vunpack.c.h.b16 %v2197
    %v2566 = vunpack.c.l.b16 %v2198
    %v2567 = vunpack.c.h.b16 %v2198
    %v2568 = vunpack.c.l.b16 %v2199
    %v2569 = vunpack.c.h.b16 %v2199
    %v2570 = vunpack.c.l.b16 %v2200
    %v2571 = vunpack.c.h.b16 %v2200
    %v2572 = vunpack.c.l.b16 %v2201
    %v2573 = vunpack.c.h.b16 %v2201
    %v2574 = vunpack.c.l.b16 %v2202
    %v2575 = vunpack.c.h.b16 %v2202
    %v2576 = vunpack.c.l.b16 %v2203
    %v2577 = vunpack.c.h.b16 %v2203
    %v2578 = vunpack.c.l.b16 %v2204
    %v2579 = vunpack.c.h.b16 %v2204
    %v2580 = vunpack.c.l.b16 %v2205
    %v2581 = vunpack.c.h.b16 %v2205
    %v2582 = vunpack.c.l.b16 %v2206
    %v2583 = vunpack.c.h.b16 %v2206
    %v2584 = vunpack.c.l.b16 %v2207
    %v2585 = vunpack.c.h.b16 %v2207
    %v2586 = vunpack.c.l.b16 %v2208
    %v2587 = vunpack.c.h.b16 %v2208
    %v2588 = vunpack.c.l.b16 %v2209
    %v2589 = vunpack.c.h.b16 %v2209
    %v2590 = vunpack.c.l.b16 %v2210
    %v2591 = vunpack.c.h.b16 %v2210
    %v2592 = vunpack.c.l.b16 %v2211
    %v2593 = vunpack.c.h.b16 %v2211
    %v2594 = vunpack.c.l.b16 %v2212
    %v2595 = vunpack.c.h.b16 %v2212
    %v2596 = vunpack.c.l.b16 %v2213
    %v2597 = vunpack.c.h.b16 %v2213
    %v2598 = vunpack.c.l.b16 %v2214
    %v2599 = vunpack.c.h.b16 %v2214
    %v2600 = vunpack.c.l.b16 %v2215
    %v2601 = vunpack.c.h.b16 %v2215
    %v2602 = vunpack.c.l.b16 %v2216
    %v2603 = vunpack.c.h.b16 %v2216
    %v2604 = vunpack.c.l.b16 %v2217
    %v2605 = vunpack.c.h.b16 %v2217
    %v2606 = vunpack.c.l.b16 %v2218
    %v2607 = vunpack.c.h.b16 %v2218
    %v2608 = vunpack.c.l.b16 %v2219
    %v2609 = vunpack.c.h.b16 %v2219
    %v2610 = vunpack.c.l.b16 %v2220
    %v2611 = vunpack.c.h.b16 %v2220
    %v2612 = vunpack.c.l.b16 %v2221
    %v2613 = vunpack.c.h.b16 %v2221
    %v2614 = vunpack.c.l.b16 %v2222
    %v2615 = vunpack.c.h.b16 %v2222
    %v2616 = vunpack.c.l.b16 %v2223
    %v2617 = vunpack.c.h.b16 %v2223
    %v2618 = vpack.c.b16 %v2366, %v2362
    %v2619 = vpack.c.b16 %v2367, %v2363
    %v2620 = vpack.c.b16 %v2368, %v2364
    %v2621 = vpack.c.b16 %v2369, %v2365
    %v2622 = vpack.c.b16 %v2374, %v2370
    %v2623 = vpack.c.b16 %v2375, %v2371
    %v2624 = vpack.c.b16 %v2376, %v2372
    %v2625 = vpack.c.b16 %v2377, %v2373
    %v2626 = vpack.c.b16 %v2382, %v2378
    %v2627 = vpack.c.b16 %v2383, %v2379
    %v2628 = vpack.c.b16 %v2384, %v2380
    %v2629 = vpack.c.b16 %v2385, %v2381
    %v2630 = vpack.c.b16 %v2390, %v2386
    %v2631 = vpack.c.b16 %v2391, %v2387
    %v2632 = vpack.c.b16 %v2392, %v2388
    %v2633 = vpack.c.b16 %v2393, %v2389
    %v2634 = vpack.c.b16 %v2398, %v2394
    %v2635 = vpack.c.b16 %v2399, %v2395
    %v2636 = vpack.c.b16 %v2400, %v2396
    %v2637 = vpack.c.b16 %v2401, %v2397
    %v2638 = vpack.c.b16 %v2406, %v2402
    %v2639 = vpack.c.b16 %v2407, %v2403
    %v2640 = vpack.c.b16 %v2408, %v2404
    %v2641 = vpack.c.b16 %v2409, %v2405
    %v2642 = vpack.c.b16 %v2414, %v2410
    %v2643 = vpack.c.b16 %v2415, %v2411
    %v2644 = vpack.c.b16 %v2416, %v2412
    %v2645 = vpack.c.b16 %v2417, %v2413
    %v2646 = vpack.c.b16 %v2422, %v2418
    %v2647 = vpack.c.b16 %v2423, %v2419
    %v2648 = vpack.c.b16 %v2424, %v2420
    %v2649 = vpack.c.b16 %v2425, %v2421
    %v2650 = vpack.c.b16 %v2430, %v2426
    %v2651 = vpack.c.b16 %v2431, %v2427
    %v2652 = vpack.c.b16 %v2432, %v2428
    %v2653 = vpack.c.b16 %v2433, %v2429
    %v2654 = vpack.c.b16 %v2438, %v2434
    %v2655 = vpack.c.b16 %v2439, %v2435
    %v2656 = vpack.c.b16 %v2440, %v2436
    %v2657 = vpack.c.b16 %v2441, %v2437
    %v2658 = vpack.c.b16 %v2446, %v2442
    %v2659 = vpack.c.b16 %v2447, %v2443
    %v2660 = vpack.c.b16 %v2448, %v2444
    %v2661 = vpack.c.b16 %v2449, %v2445
    %v2662 = vpack.c.b16 %v2454, %v2450
    %v2663 = vpack.c.b16 %v2455, %v2451
    %v2664 = vpack.c.b16 %v2456, %v2452
    %v2665 = vpack.c.b16 %v2457, %v2453
    %v2666 = vpack.c.b16 %v2462, %v2458
    %v2667 = vpack.c.b16 %v2463, %v2459
    %v2668 = vpack.c.b16 %v2464, %v2460
    %v2669 = vpack.c.b16 %v2465, %v2461
    %v2670 = vpack.c.b16 %v2470, %v2466
    %v2671 = vpack.c.b16 %v2471, %v2467
    %v2672 = vpack.c.b16 %v2472, %v2468
    %v2673 = vpack.c.b16 %v2473, %v2469
    %v2674 = vpack.c.b16 %v2478, %v2474
    %v2675 = vpack.c.b16 %v2479, %v2475
    %v2676 = vpack.c.b16 %v2480, %v2476
    %v2677 = vpack.c.b16 %v2481, %v2477
    %v2678 = vpack.c.b16 %v2486, %v2482
    %v2679 = vpack.c.b16 %v2487, %v2483
    %v2680 = vpack.c.b16 %v2488, %v2484
    %v2681 = vpack.c.b16 %v2489, %v2485
    %v2682 = vpack.c.b16 %v2494, %v2490
    %v2683 = vpack.c.b16 %v2495, %v2491
    %v2684 = vpack.c.b16 %v2496, %v2492
    %v2685 = vpack.c.b16 %v2497, %v2493
    %v2686 = vpack.c.b16 %v2502, %v2498
    %v2687 = vpack.c.b16 %v2503, %v2499
    %v2688 = vpack.c.b16 %v2504, %v2500
    %v2689 = vpack.c.b16 %v2505, %v2501
    %v2690 = vpack.c.b16 %v2510, %v2506
    %v2691 = vpack.c.b16 %v2511, %v2507
    %v2692 = vpack.c.b16 %v2512, %v2508
    %v2693 = vpack.c.b16 %v2513, %v2509
    %v2694 = vpack.c.b16 %v2518, %v2514
    %v2695 = vpack.c.b16 %v2519, %v2515
    %v2696 = vpack.c.b16 %v2520, %v2516
    %v2697 = vpack.c.b16 %v2521, %v2517
    %v2698 = vpack.c.b16 %v2526, %v2522
    %v2699 = vpack.c.b16 %v2527, %v2523
    %v2700 = vpack.c.b16 %v2528, %v2524
    %v2701 = vpack.c.b16 %v2529, %v2525
    %v2702 = vpack.c.b16 %v2534, %v2530
    %v2703 = vpack.c.b16 %v2535, %v2531
    %v2704 = vpack.c.b16 %v2536, %v2532
    %v2705 = vpack.c.b16 %v2537, %v2533
    %v2706 = vpack.c.b16 %v2542, %v2538
    %v2707 = vpack.c.b16 %v2543, %v2539
    %v2708 = vpack.c.b16 %v2544, %v2540
    %v2709 = vpack.c.b16 %v2545, %v2541
    %v2710 = vpack.c.b16 %v2550, %v2546
    %v2711 = vpack.c.b16 %v2551, %v2547
    %v2712 = vpack.c.b16 %v2552, %v2548
    %v2713 = vpack.c.b16 %v2553, %v2549
    %v2714 = vpack.c.b16 %v2558, %v2554
    %v2715 = vpack.c.b16 %v2559, %v2555
    %v2716 = vpack.c.b16 %v2560, %v2556
    %v2717 = vpack.c.b16 %v2561, %v2557
    %v2718 = vpack.c.b16 %v2566, %v2562
    %v2719 = vpack.c.b16 %v2567, %v2563
    %v2720 = vpack.c.b16 %v2568, %v2564
    %v2721 = vpack.c.b16 %v2569, %v2565
    %v2722 = vpack.c.b16 %v2574, %v2570
    %v2723 = vpack.c.b16 %v2575, %v2571
    %v2724 = vpack.c.b16 %v2576, %v2572
    %v2725 = vpack.c.b16 %v2577, %v2573
    %v2726 = vpack.c.b16 %v2582, %v2578
    %v2727 = vpack.c.b16 %v2583, %v2579
    %v2728 = vpack.c.b16 %v2584, %v2580
    %v2729 = vpack.c.b16 %v2585, %v2581
    %v2730 = vpack.c.b16 %v2590, %v2586
    %v2731 = vpack.c.b16 %v2591, %v2587
    %v2732 = vpack.c.b16 %v2592, %v2588
    %v2733 = vpack.c.b16 %v2593, %v2589
    %v2734 = vpack.c.b16 %v2598, %v2594
    %v2735 = vpack.c.b16 %v2599, %v2595
    %v2736 = vpack.c.b16 %v2600, %v2596
    %v2737 = vpack.c.b16 %v2601, %v2597
    %v2738 = vpack.c.b16 %v2606, %v2602
    %v2739 = vpack.c.b16 %v2607, %v2603
    %v2740 = vpack.c.b16 %v2608, %v2604
    %v2741 = vpack.c.b16 %v2609, %v2605
    %v2742 = vpack.c.b16 %v2614, %v2610
    %v2743 = vpack.c.b16 %v2615, %v2611
    %v2744 = vpack.c.b16 %v2616, %v2612
    %v2745 = vpack.c.b16 %v2617, %v2613
    %2874 = vmatpush.bf16.msra.mxu0 %v2646
    %2875 = vmatpush.bf16.msra.mxu0 %v2642
    %2876 = vmatpush.bf16.msra.mxu0 %v2638
    %2877 = vmatpush.bf16.msra.mxu0 %v2634
    %2878 = vmatpush.bf16.msra.mxu0 %v2630
    %2879 = vmatpush.bf16.msra.mxu0 %v2626
    %2880 = vmatpush.bf16.msra.mxu0 %v2622
    %2881 = vmatpush.bf16.msra.mxu0 %v2618
    %2882 = vmatmul.bf16.gmra.mxu0 %v72
    %v2883 = vpop.f32.mrf.mxu0
    %v2884 = vadd.f32 %v2226, %v2883
    %v2885 = vpop.f32.mrf.mxu0
    %v2886 = vadd.f32 %v2226, %v2885
    %2887 = vdwg.mxu0
    %2888 = vmatpush.bf16.msra.mxu0 %v2678
    %2889 = vmatpush.bf16.msra.mxu0 %v2674
    %2890 = vmatpush.bf16.msra.mxu0 %v2670
    %2891 = vmatpush.bf16.msra.mxu0 %v2666
    %2892 = vmatpush.bf16.msra.mxu0 %v2662
    %2893 = vmatpush.bf16.msra.mxu0 %v2658
    %2894 = vmatpush.bf16.msra.mxu0 %v2654
    %2895 = vmatpush.bf16.msra.mxu0 %v2650
    %2896 = vmatmul.bf16.gmra.mxu0 %v73
    %v2897 = vpop.f32.mrf.mxu0
    %v2898 = vadd.f32 %v2884, %v2897
    %v2899 = vpop.f32.mrf.mxu0
    %v2900 = vadd.f32 %v2886, %v2899
    %2901 = vdwg.mxu0
    %2902 = vmatpush.bf16.msra.mxu0 %v2710
    %2903 = vmatpush.bf16.msra.mxu0 %v2706
    %2904 = vmatpush.bf16.msra.mxu0 %v2702
    %2905 = vmatpush.bf16.msra.mxu0 %v2698
    %2906 = vmatpush.bf16.msra.mxu0 %v2694
    %2907 = vmatpush.bf16.msra.mxu0 %v2690
    %2908 = vmatpush.bf16.msra.mxu0 %v2686
    %2909 = vmatpush.bf16.msra.mxu0 %v2682
    %2910 = vmatmul.bf16.gmra.mxu0 %v74
    %v2911 = vpop.f32.mrf.mxu0
    %v2912 = vadd.f32 %v2898, %v2911
    %v2913 = vpop.f32.mrf.mxu0
    %v2914 = vadd.f32 %v2900, %v2913
    %2915 = vdwg.mxu0
    %2916 = vmatpush.bf16.msra.mxu0 %v2742
    %2917 = vmatpush.bf16.msra.mxu0 %v2738
    %2918 = vmatpush.bf16.msra.mxu0 %v2734
    %2919 = vmatpush.bf16.msra.mxu0 %v2730
    %2920 = vmatpush.bf16.msra.mxu0 %v2726
    %2921 = vmatpush.bf16.msra.mxu0 %v2722
    %2922 = vmatpush.bf16.msra.mxu0 %v2718
    %2923 = vmatpush.bf16.msra.mxu0 %v2714
    %2924 = vmatmul.bf16.gmra.mxu0 %v75
    %v2925 = vpop.f32.mrf.mxu0
    %v2926 = vadd.f32 %v2912, %v2925
    %v2927 = vpop.f32.mrf.mxu0
    %v2928 = vadd.f32 %v2914, %v2927
    %2929 = vdwg.mxu0
    %2930 = vmatpush.bf16.msra.mxu0 %v2647
    %2931 = vmatpush.bf16.msra.mxu0 %v2643
    %2932 = vmatpush.bf16.msra.mxu0 %v2639
    %2933 = vmatpush.bf16.msra.mxu0 %v2635
    %2934 = vmatpush.bf16.msra.mxu0 %v2631
    %2935 = vmatpush.bf16.msra.mxu0 %v2627
    %2936 = vmatpush.bf16.msra.mxu0 %v2623
    %2937 = vmatpush.bf16.msra.mxu0 %v2619
    %2938 = vmatmul.bf16.gmra.mxu0 %v72
    %v2939 = vpop.f32.mrf.mxu0
    %v2940 = vadd.f32 %v2227, %v2939
    %v2941 = vpop.f32.mrf.mxu0
    %v2942 = vadd.f32 %v2227, %v2941
    %2943 = vdwg.mxu0
    %2944 = vmatpush.bf16.msra.mxu0 %v2679
    %2945 = vmatpush.bf16.msra.mxu0 %v2675
    %2946 = vmatpush.bf16.msra.mxu0 %v2671
    %2947 = vmatpush.bf16.msra.mxu0 %v2667
    %2948 = vmatpush.bf16.msra.mxu0 %v2663
    %2949 = vmatpush.bf16.msra.mxu0 %v2659
    %2950 = vmatpush.bf16.msra.mxu0 %v2655
    %2951 = vmatpush.bf16.msra.mxu0 %v2651
    %2952 = vmatmul.bf16.gmra.mxu0 %v73
    %v2953 = vpop.f32.mrf.mxu0
    %v2954 = vadd.f32 %v2940, %v2953
    %v2955 = vpop.f32.mrf.mxu0
    %v2956 = vadd.f32 %v2942, %v2955
    %2957 = vdwg.mxu0
    %2958 = vmatpush.bf16.msra.mxu0 %v2711
    %2959 = vmatpush.bf16.msra.mxu0 %v2707
    %2960 = vmatpush.bf16.msra.mxu0 %v2703
    %2961 = vmatpush.bf16.msra.mxu0 %v2699
    %2962 = vmatpush.bf16.msra.mxu0 %v2695
    %2963 = vmatpush.bf16.msra.mxu0 %v2691
    %2964 = vmatpush.bf16.msra.mxu0 %v2687
    %2965 = vmatpush.bf16.msra.mxu0 %v2683
    %2966 = vmatmul.bf16.gmra.mxu0 %v74
    %v2967 = vpop.f32.mrf.mxu0
    %v2968 = vadd.f32 %v2954, %v2967
    %v2969 = vpop.f32.mrf.mxu0
    %v2970 = vadd.f32 %v2956, %v2969
    %2971 = vdwg.mxu0
    %2972 = vmatpush.bf16.msra.mxu0 %v2743
    %2973 = vmatpush.bf16.msra.mxu0 %v2739
    %2974 = vmatpush.bf16.msra.mxu0 %v2735
    %2975 = vmatpush.bf16.msra.mxu0 %v2731
    %2976 = vmatpush.bf16.msra.mxu0 %v2727
    %2977 = vmatpush.bf16.msra.mxu0 %v2723
    %2978 = vmatpush.bf16.msra.mxu0 %v2719
    %2979 = vmatpush.bf16.msra.mxu0 %v2715
    %2980 = vmatmul.bf16.gmra.mxu0 %v75
    %v2981 = vpop.f32.mrf.mxu0
    %v2982 = vadd.f32 %v2968, %v2981
    %v2983 = vpop.f32.mrf.mxu0
    %v2984 = vadd.f32 %v2970, %v2983
    %2985 = vdwg.mxu0
    %2986 = vmatpush.bf16.msra.mxu0 %v2648
    %2987 = vmatpush.bf16.msra.mxu0 %v2644
    %2988 = vmatpush.bf16.msra.mxu0 %v2640
    %2989 = vmatpush.bf16.msra.mxu0 %v2636
    %2990 = vmatpush.bf16.msra.mxu0 %v2632
    %2991 = vmatpush.bf16.msra.mxu0 %v2628
    %2992 = vmatpush.bf16.msra.mxu0 %v2624
    %2993 = vmatpush.bf16.msra.mxu0 %v2620
    %2994 = vmatmul.bf16.gmra.mxu0 %v72
    %v2995 = vpop.f32.mrf.mxu0
    %v2996 = vadd.f32 %v2228, %v2995
    %v2997 = vpop.f32.mrf.mxu0
    %v2998 = vadd.f32 %v2228, %v2997
    %2999 = vdwg.mxu0
    %3000 = vmatpush.bf16.msra.mxu0 %v2680
    %3001 = vmatpush.bf16.msra.mxu0 %v2676
    %3002 = vmatpush.bf16.msra.mxu0 %v2672
    %3003 = vmatpush.bf16.msra.mxu0 %v2668
    %3004 = vmatpush.bf16.msra.mxu0 %v2664
    %3005 = vmatpush.bf16.msra.mxu0 %v2660
    %3006 = vmatpush.bf16.msra.mxu0 %v2656
    %3007 = vmatpush.bf16.msra.mxu0 %v2652
    %3008 = vmatmul.bf16.gmra.mxu0 %v73
    %v3009 = vpop.f32.mrf.mxu0
    %v3010 = vadd.f32 %v2996, %v3009
    %v3011 = vpop.f32.mrf.mxu0
    %v3012 = vadd.f32 %v2998, %v3011
    %3013 = vdwg.mxu0
    %3014 = vmatpush.bf16.msra.mxu0 %v2712
    %3015 = vmatpush.bf16.msra.mxu0 %v2708
    %3016 = vmatpush.bf16.msra.mxu0 %v2704
    %3017 = vmatpush.bf16.msra.mxu0 %v2700
    %3018 = vmatpush.bf16.msra.mxu0 %v2696
    %3019 = vmatpush.bf16.msra.mxu0 %v2692
    %3020 = vmatpush.bf16.msra.mxu0 %v2688
    %3021 = vmatpush.bf16.msra.mxu0 %v2684
    %3022 = vmatmul.bf16.gmra.mxu0 %v74
    %v3023 = vpop.f32.mrf.mxu0
    %v3024 = vadd.f32 %v3010, %v3023
    %v3025 = vpop.f32.mrf.mxu0
    %v3026 = vadd.f32 %v3012, %v3025
    %3027 = vdwg.mxu0
    %3028 = vmatpush.bf16.msra.mxu0 %v2744
    %3029 = vmatpush.bf16.msra.mxu0 %v2740
    %3030 = vmatpush.bf16.msra.mxu0 %v2736
    %3031 = vmatpush.bf16.msra.mxu0 %v2732
    %3032 = vmatpush.bf16.msra.mxu0 %v2728
    %3033 = vmatpush.bf16.msra.mxu0 %v2724
    %3034 = vmatpush.bf16.msra.mxu0 %v2720
    %3035 = vmatpush.bf16.msra.mxu0 %v2716
    %3036 = vmatmul.bf16.gmra.mxu0 %v75
    %v3037 = vpop.f32.mrf.mxu0
    %v3038 = vadd.f32 %v3024, %v3037
    %v3039 = vpop.f32.mrf.mxu0
    %v3040 = vadd.f32 %v3026, %v3039
    %3041 = vdwg.mxu0
    %3042 = vmatpush.bf16.msra.mxu0 %v2649
    %3043 = vmatpush.bf16.msra.mxu0 %v2645
    %3044 = vmatpush.bf16.msra.mxu0 %v2641
    %3045 = vmatpush.bf16.msra.mxu0 %v2637
    %3046 = vmatpush.bf16.msra.mxu0 %v2633
    %3047 = vmatpush.bf16.msra.mxu0 %v2629
    %3048 = vmatpush.bf16.msra.mxu0 %v2625
    %3049 = vmatpush.bf16.msra.mxu0 %v2621
    %3050 = vmatmul.bf16.gmra.mxu0 %v72
    %v3051 = vpop.f32.mrf.mxu0
    %v3052 = vadd.f32 %v2229, %v3051
    %v3053 = vpop.f32.mrf.mxu0
    %v3054 = vadd.f32 %v2229, %v3053
    %3055 = vdwg.mxu0
    %3056 = vmatpush.bf16.msra.mxu0 %v2681
    %3057 = vmatpush.bf16.msra.mxu0 %v2677
    %3058 = vmatpush.bf16.msra.mxu0 %v2673
    %3059 = vmatpush.bf16.msra.mxu0 %v2669
    %3060 = vmatpush.bf16.msra.mxu0 %v2665
    %3061 = vmatpush.bf16.msra.mxu0 %v2661
    %3062 = vmatpush.bf16.msra.mxu0 %v2657
    %3063 = vmatpush.bf16.msra.mxu0 %v2653
    %3064 = vmatmul.bf16.gmra.mxu0 %v73
    %v3065 = vpop.f32.mrf.mxu0
    %v3066 = vadd.f32 %v3052, %v3065
    %v3067 = vpop.f32.mrf.mxu0
    %v3068 = vadd.f32 %v3054, %v3067
    %3069 = vdwg.mxu0
    %3070 = vmatpush.bf16.msra.mxu0 %v2713
    %3071 = vmatpush.bf16.msra.mxu0 %v2709
    %3072 = vmatpush.bf16.msra.mxu0 %v2705
    %3073 = vmatpush.bf16.msra.mxu0 %v2701
    %3074 = vmatpush.bf16.msra.mxu0 %v2697
    %3075 = vmatpush.bf16.msra.mxu0 %v2693
    %3076 = vmatpush.bf16.msra.mxu0 %v2689
    %3077 = vmatpush.bf16.msra.mxu0 %v2685
    %3078 = vmatmul.bf16.gmra.mxu0 %v74
    %v3079 = vpop.f32.mrf.mxu0
    %v3080 = vadd.f32 %v3066, %v3079
    %v3081 = vpop.f32.mrf.mxu0
    %v3082 = vadd.f32 %v3068, %v3081
    %3083 = vdwg.mxu0
    %3084 = vmatpush.bf16.msra.mxu0 %v2745
    %3085 = vmatpush.bf16.msra.mxu0 %v2741
    %3086 = vmatpush.bf16.msra.mxu0 %v2737
    %3087 = vmatpush.bf16.msra.mxu0 %v2733
    %3088 = vmatpush.bf16.msra.mxu0 %v2729
    %3089 = vmatpush.bf16.msra.mxu0 %v2725
    %3090 = vmatpush.bf16.msra.mxu0 %v2721
    %3091 = vmatpush.bf16.msra.mxu0 %v2717
    %3092 = vmatmul.bf16.gmra.mxu0 %v75
    %v3093 = vpop.f32.mrf.mxu0
    %v3094 = vadd.f32 %v3080, %v3093
    %v3095 = vpop.f32.mrf.mxu0
    %v3096 = vadd.f32 %v3082, %v3095
    %3097 = vdwg.mxu0
    %3098 = vst [vmem:[#allocation11] sm:$0xff] %v2926
    %3099 = vst [vmem:[#allocation11 + $0x8] sm:$0xff] %v2982
    %3100 = vst [vmem:[#allocation11 + $0x10] sm:$0xff] %v3038
    %3101 = vst [vmem:[#allocation11 + $0x18] sm:$0xff] %v3094
    %3102 = vst [vmem:[#allocation11 + $0x20] sm:$0xff] %v2928
    %3103 = vst [vmem:[#allocation11 + $0x28] sm:$0xff] %v2984
    %3104 = vst [vmem:[#allocation11 + $0x30] sm:$0xff] %v3040
    %3105 = vst [vmem:[#allocation11 + $0x38] sm:$0xff] %v3096
    // Predicated region
    $region26: #{tpu_custom_call.1} parent=1 // pred_check
      _
    $region27: #{tpu_custom_call.1} parent=1 // pred_check_branch
      %3107 = sbr.rel (0) target = $region29
    $region28: #{tpu_custom_call.1} parent=1 // pred_region
      %3109 = vsyncadd [#allocation4], 0
      %s3110 = sshll.u32 [#allocation8], 4
      %s3111 = int_to_ptr.vmem [resolvable:$true] %s3110
      %s3112 = sshll.u32 %s3, 4
      %s3113 = int_to_ptr.hbm [resolvable:$true] %s3112
      %3118 = dma.vmem_to_hbm [thread:$0]  %s3111, 1024, %s3113, [#allocation4], 512, 512, 32
    $region29: #{tpu_custom_call.1} parent=1 // pred_fallthru
      _
    // Predicated region
    $region30: #{tpu_custom_call.1} parent=1 // pred_check
      _
    $region31: #{tpu_custom_call.1} parent=1 // pred_check_branch
      %3120 = sbr.rel (0) target = $region33
    $region32: #{tpu_custom_call.1} parent=1 // pred_region
      %3122 = vsyncadd [#allocation10], 0
      %s3123 = sshll.u32 [#allocation9], 4
      %s3124 = int_to_ptr.vmem [resolvable:$true] %s3123
      %s3125 = sshll.u32 %s4, 4
      %s3126 = int_to_ptr.hbm [resolvable:$true] %s3125
      %3131 = dma.vmem_to_hbm [thread:$0]  %s3124, 1024, %s3126, [#allocation10], 512, 512, 32
    $region33: #{tpu_custom_call.1} parent=1 // pred_fallthru
      _
    // Predicated region
    $region34: #{tpu_custom_call.1} parent=1 // pred_check
      _
    $region35: #{tpu_custom_call.1} parent=1 // pred_check_branch
      %3133 = sbr.rel (0) target = $region37
    $region36: #{tpu_custom_call.1} parent=1 // pred_region
      %3135 = vsyncadd [#allocation10], 0
      %s3136 = sshll.u32 [#allocation11], 4
      %s3137 = int_to_ptr.vmem [resolvable:$true] %s3136
      %s3138 = sshll.u32 %s5, 4
      %s3139 = int_to_ptr.hbm [resolvable:$true] %s3138
      %3144 = dma.vmem_to_hbm [thread:$0]  %s3137, 1024, %s3139, [#allocation10], 512, 512, 32
    $region37: #{tpu_custom_call.1} parent=1 // pred_fallthru
      _
    // Predicated region
    $region38: #{tpu_custom_call.1} parent=1 // pred_check
      _
    $region39: #{tpu_custom_call.1} parent=1 // pred_check_branch
      %3146 = sbr.rel (0) target = $region41
    $region40: #{tpu_custom_call.1} parent=1 // pred_region
      %3148 = dma.done [#allocation4], 1024
    $region41: #{tpu_custom_call.1} parent=1 // pred_fallthru
      _
    // Predicated region
    $region42: #{tpu_custom_call.1} parent=1 // pred_check
      _
    $region43: #{tpu_custom_call.1} parent=1 // pred_check_branch
      %3150 = sbr.rel (0) target = $region45
    $region44: #{tpu_custom_call.1} parent=1 // pred_region
      %3152 = dma.done [#allocation10], 1024
    $region45: #{tpu_custom_call.1} parent=1 // pred_fallthru
      _
    // Predicated region
    $region46: #{tpu_custom_call.1} parent=1 // pred_check
      _
    $region47: #{tpu_custom_call.1} parent=1 // pred_check_branch
      %3154 = sbr.rel (0) target = $region49
    $region48: #{tpu_custom_call.1} parent=1 // pred_region
      %3156 = dma.done [#allocation10], 1024
    $region49: #{tpu_custom_call.1} parent=1 // pred_fallthru
      _
    %3157 = vsyncpa [#allocation3], 1
    %3158 = vsyncpa [#allocation6], 1
    %3159 = vsyncpa [#allocation4], 1
    %3160 = vsyncpa [#allocation10], 1

</llo_original>
